<compile_context>
chip_gen: v6e
topology: v6e:2x2x1
jax: 0.10.0
libtpu: 0.0.40
codegen_flags: <defaults>
</compile_context>

<pallas_src>
import math
from functools import partial

import jax
import jax.numpy as jnp
import numpy as np
from jax.experimental import pallas as pl
from jax.experimental.pallas import tpu as pltpu


# ----------------------------- in-kernel math helpers -----------------------------

_ERF_ALPHA = (-2.72614225801306e-10, 2.77068142495902e-08, -2.10102402082508e-06,
              -5.69250639462346e-05, -7.34990630326855e-04, -2.95459980854025e-03,
              -1.60960333262415e-02)
_ERF_BETA = (-1.45660718464996e-05, -2.13374055278905e-04, -1.68282697438203e-03,
             -7.37332916720468e-03, -1.42647390514189e-02)


def _erf_f32(x):
    # Rational erf approximation (Eigen/XLA family), |err| ~ 1e-7 on [-4, 4].
    x = jnp.clip(x, -4.0, 4.0)
    x2 = x * x
    p = jnp.full_like(x, _ERF_ALPHA[0])
    for a in _ERF_ALPHA[1:]:
        p = p * x2 + a
    p = p * x
    q = jnp.full_like(x, _ERF_BETA[0])
    for b in _ERF_BETA[1:]:
        q = q * x2 + b
    # p / q with the reciprocal on the EUP (own bundle slot) + one Newton step for ~f32
    # accuracy instead of a VALU divide.  |q| >= ~0.014 so the approx recip is safe.
    r = pl.reciprocal(q, approx=True)
    r = r * (2.0 - q * r)
    return p * r


def _gelu(x, tanh_approx):
    if tanh_approx:
        # EUP tanh; ~6 VALU ops.  Deviates from exact-erf GELU at ~1e-3 relative (opt-in).
        c = math.sqrt(2.0 / math.pi)
        return 0.5 * x * (1.0 + jnp.tanh(c * (x + 0.044715 * (x * x * x))))
    # nn.GELU() default = exact erf-based GELU.
    return 0.5 * x * (1.0 + _erf_f32(x * (1.0 / math.sqrt(2.0))))


# ----------------------------------- the kernel -----------------------------------

def mlp_kernel(x_ref, w1_ref, b1_ref, wc_ref, bc_ref, w2_ref, b2_ref, o_ref,
               *, W, N, gelu_tanh):
    """Grid = (hidden-channel tile,).  Batch is folded into the token (M) axis.

    x_ref : (M, Cin)       VMEM (constant block index -> fetched once)
    w1_ref: (Cin, TCh)     VMEM
    b1_ref: (1, TCh)       VMEM
    wc_ref: (9, TCh)       VMEM   depthwise taps, row index = dh*3 + dw
    bc_ref: (1, TCh)       VMEM
    w2_ref: (TCh, Cout_p)  VMEM
    b2_ref: (1, Cout_p)    VMEM
    o_ref : (M, Cout_p)    VMEM f32, resident across the reduction axis (accumulator)
    """
    ch = pl.program_id(0)
    M = x_ref.shape[0]

    # ---- fc1 for this hidden-channel tile (MXU) ----
    h = jnp.dot(x_ref[...], w1_ref[...], preferred_element_type=jnp.float32) + b1_ref[...]

    # ---- depthwise 3x3 conv (padding=1, groups=Ch): roll + mask formulation ----
    # Row masks zero contributions crossing the top/bottom of each HxW image (this also
    # kills cross-batch / padded-token contamination); column masks zero the left/right
    # wrap-around of the +-1 token rolls.  All shifts go to the XLU (idle slot here).
    t = jax.lax.broadcasted_iota(jnp.int32, (M, 1), 0)
    n = t % N                                      # token index within its image
    col = n % W
    rmask_t = (n >= W).astype(jnp.float32)         # a row above exists in the image
    rmask_b = (n < N - W).astype(jnp.float32)      # a row below exists in the image
    cmask_l = (col >= 1).astype(jnp.float32)       # a column to the left exists
    cmask_r = (col <= W - 2).astype(jnp.float32)   # a column to the right exists

    band_t = pltpu.roll(h, W, 0) * rmask_t         # h[token - W], zeroed on first rows
    band_b = pltpu.roll(h, M - W, 0) * rmask_b     # h[token + W], zeroed on last rows

    k = [wc_ref[i, :] for i in range(9)]           # (TCh,) each; row = dh*3 + dw
    left = band_t * k[0] + h * k[3] + band_b * k[6]
    center = band_t * k[1] + h * k[4] + band_b * k[7]
    right = band_t * k[2] + h * k[5] + band_b * k[8]

    conv = (bc_ref[...] + center
            + cmask_l * pltpu.roll(left, 1, 0)        # value from token-1 (same row)
            + cmask_r * pltpu.roll(right, M - 1, 0))  # value from token+1 (same row)

    # ---- GELU ----
    a = _gelu(conv, gelu_tanh)

    # ---- fc2 partial product (MXU), accumulated into the resident output block ----
    part = jnp.dot(a.astype(w2_ref.dtype), w2_ref[...], preferred_element_type=jnp.float32)

    @pl.when(ch == 0)
    def _init():
        o_ref[...] = part + b2_ref[...]

    @pl.when(ch > 0)
    def _accum():
        o_ref[...] = o_ref[...] + part


# ------------------------------------ wrapper --------------------------------------

def _round_up(v, m):
    return (v + m - 1) // m * m


def _auto_ch_tile(Mp, Cin, Cout_p, Ch, mm_bytes, budget_bytes):
    """Largest lane-aligned hidden tile whose rough per-step VMEM footprint fits."""
    def est(tch):
        blocks = 2 * (Mp * Cin * mm_bytes           # x block (double-buffered)
                      + Cin * tch * mm_bytes        # w1 tile
                      + tch * Cout_p * mm_bytes     # w2 tile
                      + (11 * tch + Cout_p) * 4)    # b1, bc, 9 conv taps, b2
        out_blk = Mp * Cout_p * 4                   # resident output/accumulator block
        temps = 8 * Mp * tch * 4                    # h, bands, groups, conv, act, ...
        return blocks + out_blk + temps

    cands = [Ch] + [c for c in range((Ch // 128) * 128, 0, -128) if Ch % c == 0]
    for tch in cands:
        if est(tch) <= budget_bytes:
            return tch
    return cands[-1]


def mlp_forward(x, params, H, W, *, ch_tile=None, use_bf16=False, gelu_tanh=False,
                vmem_limit_bytes=48 * 1024 * 1024):
    """Mlp forward pass as a single fused Pallas kernel.

    x      : (B, N, Cin) with N == H * W
    params : (w1 (Cin, Ch), b1 (1, Ch), wc (3, 3, Ch), bc (1, Ch), w2 (Ch, Cout), b2 (1, Cout))
    use_bf16 : cast MXU operands (x, w1, w2) to bf16 (MXU-native on v5e/v6e/v7x); f32 accum.
    gelu_tanh: opt-in tanh-approximate GELU (EUP) instead of exact erf GELU.
    vmem_limit_bytes: 48 MiB default is safe on v7x (64 MiB physical VMEM); raise toward
                      ~96 MiB on v5e/v6e (128 MiB physical) for large shapes.
    """
    w1, b1, wc, bc, w2, b2 = params
    B, N, Cin = x.shape
    assert N == H * W
    Ch = w1.shape[1]
    Cout = w2.shape[1]

    # Lane-dense output: pad fc2 output channels to a multiple of 128 (exact; padded
    # columns are zero and sliced off below).
    Cout_p = _round_up(Cout, 128)
    if Cout_p != Cout:
        w2 = jnp.pad(w2, ((0, 0), (0, Cout_p - Cout)))
        b2 = jnp.pad(b2, ((0, 0), (0, Cout_p - Cout)))

    wc9 = wc.reshape(9, Ch)                      # taps on sublanes, channels on lanes

    if use_bf16:                                 # MXU operands; biases/accum stay f32
        x = x.astype(jnp.bfloat16)
        w1 = w1.astype(jnp.bfloat16)
        w2 = w2.astype(jnp.bfloat16)
    mm_bytes = 2 if use_bf16 else 4

    # Fold batch into the matmul M dimension; pad tokens to a sublane multiple (padded
    # tokens are zero, never feed real tokens -- the row/col masks stop at image edges --
    # and are sliced off below).
    M = B * N
    Mp = _round_up(M, 8)
    xf = x.reshape(M, Cin)
    if Mp != M:
        xf = jnp.pad(xf, ((0, Mp - M), (0, 0)))

    if ch_tile is None:
        ch_tile = _auto_ch_tile(Mp, Cin, Cout_p, Ch, mm_bytes,
                                int(0.75 * vmem_limit_bytes))
    assert Ch % ch_tile == 0 and (ch_tile == Ch or ch_tile % 128 == 0), \
        "hidden tile must divide Ch and be lane aligned"
    n_ch = Ch // ch_tile

    flops = (2 * Mp * Cin * Ch                              # fc1
             + 25 * Mp * Ch                                 # depthwise conv + masks
             + (10 if gelu_tanh else 22) * Mp * Ch          # GELU
             + 2 * Mp * Ch * Cout_p)                        # fc2
    bytes_accessed = (int(xf.size) * xf.dtype.itemsize
                      + sum(int(a.size) * a.dtype.itemsize
                            for a in (w1, b1, wc9, bc, w2, b2))
                      + Mp * Cout_p * 4)
    cost = pl.CostEstimate(flops=int(flops), transcendentals=int(Mp * Ch),
                           bytes_accessed=int(bytes_accessed))

    kernel = partial(mlp_kernel, W=W, N=N, gelu_tanh=gelu_tanh)
    out = pl.pallas_call(
        kernel,
        out_shape=jax.ShapeDtypeStruct((Mp, Cout_p), jnp.float32),
        grid_spec=pltpu.PrefetchScalarGridSpec(
            num_scalar_prefetch=0,
            grid=(n_ch,),                                          # hidden-channel reduction
            in_specs=[
                pl.BlockSpec((Mp, Cin), lambda c: (0, 0)),         # x (fetched once)
                pl.BlockSpec((Cin, ch_tile), lambda c: (0, c)),    # w1 tile
                pl.BlockSpec((1, ch_tile), lambda c: (0, c)),      # b1 tile
                pl.BlockSpec((9, ch_tile), lambda c: (0, c)),      # conv taps tile
                pl.BlockSpec((1, ch_tile), lambda c: (0, c)),      # conv bias tile
                pl.BlockSpec((ch_tile, Cout_p), lambda c: (c, 0)), # w2 tile
                pl.BlockSpec((1, Cout_p), lambda c: (0, 0)),       # b2
            ],
            out_specs=pl.BlockSpec((Mp, Cout_p), lambda c: (0, 0)),  # resident accumulator
        ),
        compiler_params=pltpu.CompilerParams(
            dimension_semantics=("arbitrary",),
            vmem_limit_bytes=int(vmem_limit_bytes),
        ),
        cost_estimate=cost,
    )(xf, w1, b1, wc9, bc, w2, b2)

    return out[:M, :Cout].reshape(B, N, Cout)


# ------------------------------ pure-JAX reference ---------------------------------

def mlp_reference(x, params, H, W):
    w1, b1, wc, bc, w2, b2 = params
    B, N, Cin = x.shape
    Ch = w1.shape[1]
    pr = jax.lax.Precision.HIGHEST
    h = jnp.matmul(x, w1, precision=pr) + b1                        # (B, N, Ch)
    hh = h.reshape(B, H, W, Ch)
    hp = jnp.pad(hh, ((0, 0), (1, 1), (1, 1), (0, 0)))
    acc = jnp.zeros((B, H, W, Ch), jnp.float32) + bc.reshape(1, 1, 1, Ch)
    for dh in range(3):
        for dw in range(3):
            acc = acc + hp[:, dh:dh + H, dw:dw + W, :] * wc[dh, dw, :]
    a = 0.5 * acc * (1.0 + jax.scipy.special.erf(acc / jnp.sqrt(2.0)))
    return jnp.matmul(a.reshape(B, N, Ch), w2, precision=pr) + b2


# ------------------------------------- main ----------------------------------------

if __name__ == "__main__":
    B, H, W = 2, 8, 8
    N = H * W

    def make_params(key, Cin, Ch, Cout):
        k1, k2, kc, kb1, kb2, kbc = jax.random.split(key, 6)
        w1 = (0.02 * jax.random.normal(k1, (Cin, Ch))).astype(jnp.float32)
        b1 = (0.01 * jax.random.normal(kb1, (1, Ch))).astype(jnp.float32)
        wc = (math.sqrt(2.0 / 9.0) * jax.random.normal(kc, (3, 3, Ch))).astype(jnp.float32)
        bc = (0.01 * jax.random.normal(kbc, (1, Ch))).astype(jnp.float32)
        w2 = (0.02 * jax.random.normal(k2, (Ch, Cout))).astype(jnp.float32)
        b2 = (0.01 * jax.random.normal(kb2, (1, Cout))).astype(jnp.float32)
        return (w1, b1, wc, bc, w2, b2)

    key = jax.random.PRNGKey(0)
    kx, kp1, kp2 = jax.random.split(key, 3)
    x1 = jax.random.normal(kx, (B, N, 16), jnp.float32)

    # Test 1: module-sized small shapes, exact f32 path (single hidden tile).
    params1 = make_params(kp1, 16, 32, 16)
    out1 = jax.block_until_ready(mlp_forward(x1, params1, H, W))
    ref1 = jax.block_until_ready(mlp_reference(x1, params1, H, W))
    assert out1.shape == (B, N, 16)
    np.testing.assert_allclose(np.asarray(out1), np.asarray(ref1), rtol=1e-4, atol=1e-4)

    # Test 2: wider hidden dim exercising the hidden-channel reduction axis (2 tiles).
    params2 = make_params(kp2, 16, 256, 16)
    out2 = jax.block_until_ready(mlp_forward(x1, params2, H, W, ch_tile=128))
    ref2 = jax.block_until_ready(mlp_reference(x1, params2, H, W))
    np.testing.assert_allclose(np.asarray(out2), np.asarray(ref2), rtol=2e-4, atol=2e-4)

    # Test 3: bf16 MXU operands (v5e/v6e/v7x MXU-native), f32 accumulation.
    out3 = jax.block_until_ready(mlp_forward(x1, params1, H, W, use_bf16=True))
    np.testing.assert_allclose(np.asarray(out3), np.asarray(ref1), rtol=2e-2, atol=2e-3)

    # Test 4: opt-in tanh-approximate GELU (EUP) against the exact-erf reference.
    out4 = jax.block_until_ready(mlp_forward(x1, params1, H, W, gelu_tanh=True))
    np.testing.assert_allclose(np.asarray(out4), np.asarray(ref1), rtol=1e-2, atol=1e-3)

    print("KERNEL_OK")
</pallas_src>

<mosaic_0001>
module attributes {stable_mosaic.version = 11 : i64} {
  func.func @mlp_kernel(%arg0: i32, %arg1: memref<128x16xf32, #tpu.memory_space<vmem>>, %arg2: memref<16x32xf32, #tpu.memory_space<vmem>>, %arg3: memref<1x32xf32, #tpu.memory_space<vmem>>, %arg4: memref<9x32xf32, #tpu.memory_space<vmem>>, %arg5: memref<1x32xf32, #tpu.memory_space<vmem>>, %arg6: memref<32x128xf32, #tpu.memory_space<vmem>>, %arg7: memref<1x128xf32, #tpu.memory_space<vmem>>, %arg8: memref<128x128xf32, #tpu.memory_space<vmem>>) attributes {dimension_semantics = [#tpu.dimension_semantics<arbitrary>], iteration_bounds = array<i64: 1>, scalar_prefetch = 0 : i64, scratch_operands = 0 : i64, tpu.core_type = #tpu.core_type<tc>, window_params = [{pipeline_mode = #tpu.pipeline_mode<synchronous>, transform_indices = @transform_0, window_bounds = array<i64: 128, 16>}, {transform_indices = @transform_1, window_bounds = array<i64: 16, 32>}, {transform_indices = @transform_2, window_bounds = array<i64: 1, 32>}, {transform_indices = @transform_3, window_bounds = array<i64: 9, 32>}, {transform_indices = @transform_4, window_bounds = array<i64: 1, 32>}, {transform_indices = @transform_5, window_bounds = array<i64: 32, 128>}, {pipeline_mode = #tpu.pipeline_mode<synchronous>, transform_indices = @transform_6, window_bounds = array<i64: 1, 128>}, {pipeline_mode = #tpu.pipeline_mode<synchronous>, transform_indices = @transform_7, window_bounds = array<i64: 128, 128>}]} {
    %c0 = arith.constant 0 : index
    %c0_0 = arith.constant 0 : index
    %0 = vector.load %arg1[%c0, %c0_0] : memref<128x16xf32, #tpu.memory_space<vmem>>, vector<128x16xf32>
    %c0_1 = arith.constant 0 : index
    %c0_2 = arith.constant 0 : index
    %1 = vector.load %arg2[%c0_1, %c0_2] : memref<16x32xf32, #tpu.memory_space<vmem>>, vector<16x32xf32>
    %cst = arith.constant dense<0.000000e+00> : vector<128x32xf32>
    %2 = tpu.matmul %0, %1, %cst {dimension_numbers = #tpu.dot_dimension_numbers<[1], [0], [0], [1], [0, 0, 1, 1], [], []>} : vector<128x16xf32>, vector<16x32xf32>, vector<128x32xf32> -> vector<128x32xf32>
    %c0_3 = arith.constant 0 : index
    %c0_4 = arith.constant 0 : index
    %3 = vector.load %arg3[%c0_3, %c0_4] : memref<1x32xf32, #tpu.memory_space<vmem>>, vector<1x32xf32>
    %4 = vector.broadcast %3 : vector<1x32xf32> to vector<128x32xf32>
    %5 = arith.addf %2, %4 : vector<128x32xf32>
    %6 = tpu.iota {dimensions = array<i32: 0>} : vector<128x1xi32>
    %c64_i32 = arith.constant 64 : i32
    %c0_i32 = arith.constant 0 : i32
    %7 = arith.cmpi eq, %c64_i32, %c0_i32 : i32
    %c1_i32 = arith.constant 1 : i32
    %8 = arith.select %7, %c1_i32, %c64_i32 : i32
    %9 = vector.broadcast %8 : i32 to vector<128x1xi32>
    %10 = arith.remsi %6, %9 : vector<128x1xi32>
    %c0_i32_5 = arith.constant 0 : i32
    %11 = vector.broadcast %c0_i32_5 : i32 to vector<128x1xi32>
    %12 = arith.cmpi ne, %10, %11 : vector<128x1xi32>
    %c0_i32_6 = arith.constant 0 : i32
    %13 = vector.broadcast %c0_i32_6 : i32 to vector<128x1xi32>
    %14 = arith.cmpi slt, %10, %13 : vector<128x1xi32>
    %c0_i32_7 = arith.constant 0 : i32
    %15 = arith.cmpi slt, %8, %c0_i32_7 : i32
    %16 = vector.broadcast %15 : i1 to vector<128x1xi1>
    %17 = vector.broadcast %16 : vector<128x1xi1> to vector<128x1xi1>
    %18 = arith.xori %14, %17 : vector<128x1xi1>
    %19 = arith.andi %18, %12 : vector<128x1xi1>
    %20 = vector.broadcast %8 : i32 to vector<128x1xi32>
    %21 = arith.addi %10, %20 : vector<128x1xi32>
    %22 = arith.select %19, %21, %10 : vector<128x1xi1>, vector<128x1xi32>
    %c8_i32 = arith.constant 8 : i32
    %c0_i32_8 = arith.constant 0 : i32
    %23 = arith.cmpi eq, %c8_i32, %c0_i32_8 : i32
    %c1_i32_9 = arith.constant 1 : i32
    %24 = arith.select %23, %c1_i32_9, %c8_i32 : i32
    %25 = vector.broadcast %24 : i32 to vector<128x1xi32>
    %26 = arith.remsi %22, %25 : vector<128x1xi32>
    %c0_i32_10 = arith.constant 0 : i32
    %27 = vector.broadcast %c0_i32_10 : i32 to vector<128x1xi32>
    %28 = arith.cmpi ne, %26, %27 : vector<128x1xi32>
    %c0_i32_11 = arith.constant 0 : i32
    %29 = vector.broadcast %c0_i32_11 : i32 to vector<128x1xi32>
    %30 = arith.cmpi slt, %26, %29 : vector<128x1xi32>
    %c0_i32_12 = arith.constant 0 : i32
    %31 = arith.cmpi slt, %24, %c0_i32_12 : i32
    %32 = vector.broadcast %31 : i1 to vector<128x1xi1>
    %33 = vector.broadcast %32 : vector<128x1xi1> to vector<128x1xi1>
    %34 = arith.xori %30, %33 : vector<128x1xi1>
    %35 = arith.andi %34, %28 : vector<128x1xi1>
    %36 = vector.broadcast %24 : i32 to vector<128x1xi32>
    %37 = arith.addi %26, %36 : vector<128x1xi32>
    %38 = arith.select %35, %37, %26 : vector<128x1xi1>, vector<128x1xi32>
    %c8_i32_13 = arith.constant 8 : i32
    %39 = vector.broadcast %c8_i32_13 : i32 to vector<128x1xi32>
    %40 = arith.cmpi sge, %22, %39 : vector<128x1xi32>
    %41 = arith.extui %40 : vector<128x1xi1> to vector<128x1xi32>
    %42 = arith.sitofp %41 : vector<128x1xi32> to vector<128x1xf32>
    %c56_i32 = arith.constant 56 : i32
    %43 = vector.broadcast %c56_i32 : i32 to vector<128x1xi32>
    %44 = arith.cmpi slt, %22, %43 : vector<128x1xi32>
    %45 = arith.extui %44 : vector<128x1xi1> to vector<128x1xi32>
    %46 = arith.sitofp %45 : vector<128x1xi32> to vector<128x1xf32>
    %c1_i32_14 = arith.constant 1 : i32
    %47 = vector.broadcast %c1_i32_14 : i32 to vector<128x1xi32>
    %48 = arith.cmpi sge, %38, %47 : vector<128x1xi32>
    %49 = arith.extui %48 : vector<128x1xi1> to vector<128x1xi32>
    %50 = arith.sitofp %49 : vector<128x1xi32> to vector<128x1xf32>
    %c6_i32 = arith.constant 6 : i32
    %51 = vector.broadcast %c6_i32 : i32 to vector<128x1xi32>
    %52 = arith.cmpi sle, %38, %51 : vector<128x1xi32>
    %53 = arith.extui %52 : vector<128x1xi1> to vector<128x1xi32>
    %54 = arith.sitofp %53 : vector<128x1xi32> to vector<128x1xf32>
    %c8_i32_15 = arith.constant 8 : i32
    %55 = tpu.dynamic_rotate %5 by %c8_i32_15 dim 0 : vector<128x32xf32>, i32 -> vector<128x32xf32>
    %56 = vector.broadcast %42 : vector<128x1xf32> to vector<128x32xf32>
    %57 = arith.mulf %55, %56 : vector<128x32xf32>
    %c120_i32 = arith.constant 120 : i32
    %58 = tpu.dynamic_rotate %5 by %c120_i32 dim 0 : vector<128x32xf32>, i32 -> vector<128x32xf32>
    %59 = vector.broadcast %46 : vector<128x1xf32> to vector<128x32xf32>
    %60 = arith.mulf %58, %59 : vector<128x32xf32>
    %c0_16 = arith.constant 0 : index
    %c0_17 = arith.constant 0 : index
    %61 = vector.load %arg4[%c0_16, %c0_17] : memref<9x32xf32, #tpu.memory_space<vmem>>, vector<1x32xf32>
    %62 = vector.shape_cast %61 : vector<1x32xf32> to vector<32xf32>
    %c1 = arith.constant 1 : index
    %c0_18 = arith.constant 0 : index
    %63 = vector.load %arg4[%c1, %c0_18] : memref<9x32xf32, #tpu.memory_space<vmem>>, vector<1x32xf32>
    %64 = vector.shape_cast %63 : vector<1x32xf32> to vector<32xf32>
    %c2 = arith.constant 2 : index
    %c0_19 = arith.constant 0 : index
    %65 = vector.load %arg4[%c2, %c0_19] : memref<9x32xf32, #tpu.memory_space<vmem>>, vector<1x32xf32>
    %66 = vector.shape_cast %65 : vector<1x32xf32> to vector<32xf32>
    %c3 = arith.constant 3 : index
    %c0_20 = arith.constant 0 : index
    %67 = vector.load %arg4[%c3, %c0_20] : memref<9x32xf32, #tpu.memory_space<vmem>>, vector<1x32xf32>
    %68 = vector.shape_cast %67 : vector<1x32xf32> to vector<32xf32>
    %c4 = arith.constant 4 : index
    %c0_21 = arith.constant 0 : index
    %69 = vector.load %arg4[%c4, %c0_21] : memref<9x32xf32, #tpu.memory_space<vmem>>, vector<1x32xf32>
    %70 = vector.shape_cast %69 : vector<1x32xf32> to vector<32xf32>
    %c5 = arith.constant 5 : index
    %c0_22 = arith.constant 0 : index
    %71 = vector.load %arg4[%c5, %c0_22] : memref<9x32xf32, #tpu.memory_space<vmem>>, vector<1x32xf32>
    %72 = vector.shape_cast %71 : vector<1x32xf32> to vector<32xf32>
    %c6 = arith.constant 6 : index
    %c0_23 = arith.constant 0 : index
    %73 = vector.load %arg4[%c6, %c0_23] : memref<9x32xf32, #tpu.memory_space<vmem>>, vector<1x32xf32>
    %74 = vector.shape_cast %73 : vector<1x32xf32> to vector<32xf32>
    %c7 = arith.constant 7 : index
    %c0_24 = arith.constant 0 : index
    %75 = vector.load %arg4[%c7, %c0_24] : memref<9x32xf32, #tpu.memory_space<vmem>>, vector<1x32xf32>
    %76 = vector.shape_cast %75 : vector<1x32xf32> to vector<32xf32>
    %c8 = arith.constant 8 : index
    %c0_25 = arith.constant 0 : index
    %77 = vector.load %arg4[%c8, %c0_25] : memref<9x32xf32, #tpu.memory_space<vmem>>, vector<1x32xf32>
    %78 = vector.shape_cast %77 : vector<1x32xf32> to vector<32xf32>
    %79 = vector.shape_cast %62 : vector<32xf32> to vector<1x32xf32>
    %80 = vector.broadcast %79 : vector<1x32xf32> to vector<128x32xf32>
    %81 = arith.mulf %57, %80 : vector<128x32xf32>
    %82 = vector.shape_cast %68 : vector<32xf32> to vector<1x32xf32>
    %83 = vector.broadcast %82 : vector<1x32xf32> to vector<128x32xf32>
    %84 = arith.mulf %5, %83 : vector<128x32xf32>
    %85 = arith.addf %81, %84 : vector<128x32xf32>
    %86 = vector.shape_cast %74 : vector<32xf32> to vector<1x32xf32>
    %87 = vector.broadcast %86 : vector<1x32xf32> to vector<128x32xf32>
    %88 = arith.mulf %60, %87 : vector<128x32xf32>
    %89 = arith.addf %85, %88 : vector<128x32xf32>
    %90 = vector.shape_cast %64 : vector<32xf32> to vector<1x32xf32>
    %91 = vector.broadcast %90 : vector<1x32xf32> to vector<128x32xf32>
    %92 = arith.mulf %57, %91 : vector<128x32xf32>
    %93 = vector.shape_cast %70 : vector<32xf32> to vector<1x32xf32>
    %94 = vector.broadcast %93 : vector<1x32xf32> to vector<128x32xf32>
    %95 = arith.mulf %5, %94 : vector<128x32xf32>
    %96 = arith.addf %92, %95 : vector<128x32xf32>
    %97 = vector.shape_cast %76 : vector<32xf32> to vector<1x32xf32>
    %98 = vector.broadcast %97 : vector<1x32xf32> to vector<128x32xf32>
    %99 = arith.mulf %60, %98 : vector<128x32xf32>
    %100 = arith.addf %96, %99 : vector<128x32xf32>
    %101 = vector.shape_cast %66 : vector<32xf32> to vector<1x32xf32>
    %102 = vector.broadcast %101 : vector<1x32xf32> to vector<128x32xf32>
    %103 = arith.mulf %57, %102 : vector<128x32xf32>
    %104 = vector.shape_cast %72 : vector<32xf32> to vector<1x32xf32>
    %105 = vector.broadcast %104 : vector<1x32xf32> to vector<128x32xf32>
    %106 = arith.mulf %5, %105 : vector<128x32xf32>
    %107 = arith.addf %103, %106 : vector<128x32xf32>
    %108 = vector.shape_cast %78 : vector<32xf32> to vector<1x32xf32>
    %109 = vector.broadcast %108 : vector<1x32xf32> to vector<128x32xf32>
    %110 = arith.mulf %60, %109 : vector<128x32xf32>
    %111 = arith.addf %107, %110 : vector<128x32xf32>
    %c0_26 = arith.constant 0 : index
    %c0_27 = arith.constant 0 : index
    %112 = vector.load %arg5[%c0_26, %c0_27] : memref<1x32xf32, #tpu.memory_space<vmem>>, vector<1x32xf32>
    %113 = vector.broadcast %112 : vector<1x32xf32> to vector<128x32xf32>
    %114 = arith.addf %113, %100 : vector<128x32xf32>
    %c1_i32_28 = arith.constant 1 : i32
    %115 = tpu.dynamic_rotate %89 by %c1_i32_28 dim 0 : vector<128x32xf32>, i32 -> vector<128x32xf32>
    %116 = vector.broadcast %50 : vector<128x1xf32> to vector<128x32xf32>
    %117 = arith.mulf %116, %115 : vector<128x32xf32>
    %118 = arith.addf %114, %117 : vector<128x32xf32>
    %c127_i32 = arith.constant 127 : i32
    %119 = tpu.dynamic_rotate %111 by %c127_i32 dim 0 : vector<128x32xf32>, i32 -> vector<128x32xf32>
    %120 = vector.broadcast %54 : vector<128x1xf32> to vector<128x32xf32>
    %121 = arith.mulf %120, %119 : vector<128x32xf32>
    %122 = arith.addf %118, %121 : vector<128x32xf32>
    %cst_29 = arith.constant 5.000000e-01 : f32
    %123 = vector.broadcast %cst_29 : f32 to vector<128x32xf32>
    %124 = arith.mulf %123, %122 : vector<128x32xf32>
    %cst_30 = arith.constant 0.707106769 : f32
    %125 = vector.broadcast %cst_30 : f32 to vector<128x32xf32>
    %126 = arith.mulf %122, %125 : vector<128x32xf32>
    %cst_31 = arith.constant -4.000000e+00 : f32
    %cst_32 = arith.constant 4.000000e+00 : f32
    %127 = vector.broadcast %cst_31 : f32 to vector<128x32xf32>
    %128 = arith.maximumf %127, %126 : vector<128x32xf32>
    %129 = vector.broadcast %cst_32 : f32 to vector<128x32xf32>
    %130 = arith.minimumf %129, %128 : vector<128x32xf32>
    %131 = arith.mulf %130, %130 : vector<128x32xf32>
    %cst_33 = arith.constant -2.72614237E-10 : f32
    %132 = vector.broadcast %cst_33 : f32 to vector<128x32xf32>
    %133 = arith.mulf %132, %131 : vector<128x32xf32>
    %cst_34 = arith.constant 2.77068146E-8 : f32
    %134 = vector.broadcast %cst_34 : f32 to vector<128x32xf32>
    %135 = arith.addf %133, %134 : vector<128x32xf32>
    %136 = arith.mulf %135, %131 : vector<128x32xf32>
    %cst_35 = arith.constant -2.10102394E-6 : f32
    %137 = vector.broadcast %cst_35 : f32 to vector<128x32xf32>
    %138 = arith.addf %136, %137 : vector<128x32xf32>
    %139 = arith.mulf %138, %131 : vector<128x32xf32>
    %cst_36 = arith.constant -5.69250624E-5 : f32
    %140 = vector.broadcast %cst_36 : f32 to vector<128x32xf32>
    %141 = arith.addf %139, %140 : vector<128x32xf32>
    %142 = arith.mulf %141, %131 : vector<128x32xf32>
    %cst_37 = arith.constant -7.34990637E-4 : f32
    %143 = vector.broadcast %cst_37 : f32 to vector<128x32xf32>
    %144 = arith.addf %142, %143 : vector<128x32xf32>
    %145 = arith.mulf %144, %131 : vector<128x32xf32>
    %cst_38 = arith.constant -2.954600e-03 : f32
    %146 = vector.broadcast %cst_38 : f32 to vector<128x32xf32>
    %147 = arith.addf %145, %146 : vector<128x32xf32>
    %148 = arith.mulf %147, %131 : vector<128x32xf32>
    %cst_39 = arith.constant -0.0160960332 : f32
    %149 = vector.broadcast %cst_39 : f32 to vector<128x32xf32>
    %150 = arith.addf %148, %149 : vector<128x32xf32>
    %151 = arith.mulf %150, %130 : vector<128x32xf32>
    %cst_40 = arith.constant -1.45660715E-5 : f32
    %152 = vector.broadcast %cst_40 : f32 to vector<128x32xf32>
    %153 = arith.mulf %152, %131 : vector<128x32xf32>
    %cst_41 = arith.constant -2.13374049E-4 : f32
    %154 = vector.broadcast %cst_41 : f32 to vector<128x32xf32>
    %155 = arith.addf %153, %154 : vector<128x32xf32>
    %156 = arith.mulf %155, %131 : vector<128x32xf32>
    %cst_42 = arith.constant -0.00168282702 : f32
    %157 = vector.broadcast %cst_42 : f32 to vector<128x32xf32>
    %158 = arith.addf %156, %157 : vector<128x32xf32>
    %159 = arith.mulf %158, %131 : vector<128x32xf32>
    %cst_43 = arith.constant -0.00737332925 : f32
    %160 = vector.broadcast %cst_43 : f32 to vector<128x32xf32>
    %161 = arith.addf %159, %160 : vector<128x32xf32>
    %162 = arith.mulf %161, %131 : vector<128x32xf32>
    %cst_44 = arith.constant -0.0142647391 : f32
    %163 = vector.broadcast %cst_44 : f32 to vector<128x32xf32>
    %164 = arith.addf %162, %163 : vector<128x32xf32>
    %165 = tpu.reciprocal %164 {approx = true} : vector<128x32xf32> -> vector<128x32xf32>
    %166 = arith.mulf %164, %165 : vector<128x32xf32>
    %cst_45 = arith.constant 2.000000e+00 : f32
    %167 = vector.broadcast %cst_45 : f32 to vector<128x32xf32>
    %168 = arith.subf %167, %166 : vector<128x32xf32>
    %169 = arith.mulf %165, %168 : vector<128x32xf32>
    %170 = arith.mulf %151, %169 : vector<128x32xf32>
    %cst_46 = arith.constant 1.000000e+00 : f32
    %171 = vector.broadcast %cst_46 : f32 to vector<128x32xf32>
    %172 = arith.addf %171, %170 : vector<128x32xf32>
    %173 = arith.mulf %124, %172 : vector<128x32xf32>
    %c0_47 = arith.constant 0 : index
    %c0_48 = arith.constant 0 : index
    %174 = vector.load %arg6[%c0_47, %c0_48] : memref<32x128xf32, #tpu.memory_space<vmem>>, vector<32x128xf32>
    %cst_49 = arith.constant dense<0.000000e+00> : vector<128x128xf32>
    %175 = tpu.matmul %173, %174, %cst_49 {dimension_numbers = #tpu.dot_dimension_numbers<[1], [0], [0], [1], [0, 0, 1, 1], [], []>} : vector<128x32xf32>, vector<32x128xf32>, vector<128x128xf32> -> vector<128x128xf32>
    %c0_i32_50 = arith.constant 0 : i32
    %176 = arith.cmpi eq, %arg0, %c0_i32_50 : i32
    %177 = arith.extui %176 : i1 to i32
    %c0_i32_51 = arith.constant 0 : i32
    %178 = arith.cmpi ne, %177, %c0_i32_51 : i32
    scf.if %178 {
      %c0_54 = arith.constant 0 : index
      %c0_55 = arith.constant 0 : index
      %182 = vector.load %arg7[%c0_54, %c0_55] : memref<1x128xf32, #tpu.memory_space<vmem>>, vector<1x128xf32>
      %183 = vector.broadcast %182 : vector<1x128xf32> to vector<128x128xf32>
      %184 = arith.addf %175, %183 : vector<128x128xf32>
      %c0_56 = arith.constant 0 : index
      %c0_57 = arith.constant 0 : index
      %185 = vector.load %arg8[%c0_56, %c0_57] : memref<128x128xf32, #tpu.memory_space<vmem>>, vector<128x128xf32>
      tpu.vector_store %arg8[%c0_56, %c0_57], %184 {strides = array<i32>} : memref<128x128xf32, #tpu.memory_space<vmem>>, vector<128x128xf32>,
    } else {
    }
    %c0_i32_52 = arith.constant 0 : i32
    %179 = arith.cmpi sgt, %arg0, %c0_i32_52 : i32
    %180 = arith.extui %179 : i1 to i32
    %c0_i32_53 = arith.constant 0 : i32
    %181 = arith.cmpi ne, %180, %c0_i32_53 : i32
    scf.if %181 {
      %c0_54 = arith.constant 0 : index
      %c0_55 = arith.constant 0 : index
      %182 = vector.load %arg8[%c0_54, %c0_55] : memref<128x128xf32, #tpu.memory_space<vmem>>, vector<128x128xf32>
      %183 = arith.addf %182, %175 : vector<128x128xf32>
      %c0_56 = arith.constant 0 : index
      %c0_57 = arith.constant 0 : index
      %184 = vector.load %arg8[%c0_56, %c0_57] : memref<128x128xf32, #tpu.memory_space<vmem>>, vector<128x128xf32>
      tpu.vector_store %arg8[%c0_56, %c0_57], %183 {strides = array<i32>} : memref<128x128xf32, #tpu.memory_space<vmem>>, vector<128x128xf32>,
    } else {
    }
    return
  }
  func.func @transform_0(%arg0: i32) -> (i32, i32) {
    %c0_i32 = arith.constant 0 : i32
    %c0_i32_0 = arith.constant 0 : i32
    %c0_i32_1 = arith.constant 0 : i32
    return %c0_i32, %c0_i32_0 : i32, i32
  }
  func.func @transform_1(%arg0: i32) -> (i32, i32) {
    %c0_i32 = arith.constant 0 : i32
    %c0_i32_0 = arith.constant 0 : i32
    return %c0_i32, %arg0 : i32, i32
  }
  func.func @transform_2(%arg0: i32) -> (i32, i32) {
    %c0_i32 = arith.constant 0 : i32
    %c0_i32_0 = arith.constant 0 : i32
    return %c0_i32, %arg0 : i32, i32
  }
  func.func @transform_3(%arg0: i32) -> (i32, i32) {
    %c0_i32 = arith.constant 0 : i32
    %c0_i32_0 = arith.constant 0 : i32
    return %c0_i32, %arg0 : i32, i32
  }
  func.func @transform_4(%arg0: i32) -> (i32, i32) {
    %c0_i32 = arith.constant 0 : i32
    %c0_i32_0 = arith.constant 0 : i32
    return %c0_i32, %arg0 : i32, i32
  }
  func.func @transform_5(%arg0: i32) -> (i32, i32) {
    %c0_i32 = arith.constant 0 : i32
    %c0_i32_0 = arith.constant 0 : i32
    return %arg0, %c0_i32 : i32, i32
  }
  func.func @transform_6(%arg0: i32) -> (i32, i32) {
    %c0_i32 = arith.constant 0 : i32
    %c0_i32_0 = arith.constant 0 : i32
    %c0_i32_1 = arith.constant 0 : i32
    return %c0_i32, %c0_i32_0 : i32, i32
  }
  func.func @transform_7(%arg0: i32) -> (i32, i32) {
    %c0_i32 = arith.constant 0 : i32
    %c0_i32_0 = arith.constant 0 : i32
    %c0_i32_1 = arith.constant 0 : i32
    return %c0_i32, %c0_i32_0 : i32, i32
  }
}

</mosaic_0001>

<llo_original>
// kernel: tpu_custom_call.1
$region0: #{tpu_custom_call.1}
  #allocation0 [shape = 'u32[]', space=smem, size = 0x4, offset = 0x4, fixed_abs, tag = 'smem constant byte address 0x4 - core index']
  #allocation1 [shape = 'u32[144,128]{1,0:T(1,128)}', space=vmem, size = 0x12000, scoped, tag = 'internal scratch']
  %s0 = inlined_call_operand.vmem [shape: f32[128,16], index: 0, kind: input, shape index: {}]
  %s1 = inlined_call_operand.vmem [shape: f32[16,32], index: 1, kind: input, shape index: {}]
  %s2 = inlined_call_operand.vmem [shape: f32[1,32], index: 2, kind: input, shape index: {}]
  %s3 = inlined_call_operand.vmem [shape: f32[9,32], index: 3, kind: input, shape index: {}]
  %s4 = inlined_call_operand.vmem [shape: f32[1,32], index: 4, kind: input, shape index: {}]
  %s5 = inlined_call_operand.vmem [shape: f32[32,128], index: 5, kind: input, shape index: {}]
  %s6 = inlined_call_operand.vmem [shape: f32[1,128], index: 6, kind: input, shape index: {}]
  %s7 = inlined_call_operand.hbm [shape: f32[128,128], index: 7, kind: output, shape index: {}]
  %s8 = sld [smem:[#allocation0]]
  $region46: #{tpu_custom_call.1} parent=0
    _
  %s10 = ssub.s32 1, %s8
  %s11 = scalar_select 0, %s10, %s8
  $region1: #{tpu_custom_call.1} parent=0
    #allocation2 [shape = 'u8[65536]{0}', space=vmem, size = 0x10000, scoped, tag = 'output window, operand 0, single buffered']
    #allocation3 [shape = 's32[1]{0}', space=sflag, size = 0x4, scoped, tag = 'scoped memory for tpu_custom_call.1']
    %12 = vsyncpa [#allocation3], 0
    // Predicated region
    $region2: #{tpu_custom_call.1} parent=1 // pred_check
      _
    $region3: #{tpu_custom_call.1} parent=1 // pred_check_branch
      %14 = sbr.rel (0) target = $region5
    $region4: #{tpu_custom_call.1} parent=1 // pred_region
      _
    $region5: #{tpu_custom_call.1} parent=1 // pred_fallthru
      _
    // Predicated region
    $region6: #{tpu_custom_call.1} parent=1 // pred_check
      _
    $region7: #{tpu_custom_call.1} parent=1 // pred_check_branch
      %16 = sbr.rel (0) target = $region9
    $region8: #{tpu_custom_call.1} parent=1 // pred_region
      _
    $region9: #{tpu_custom_call.1} parent=1 // pred_fallthru
      _
    // Predicated region
    $region10: #{tpu_custom_call.1} parent=1 // pred_check
      _
    $region11: #{tpu_custom_call.1} parent=1 // pred_check_branch
      %18 = sbr.rel (0) target = $region13
    $region12: #{tpu_custom_call.1} parent=1 // pred_region
      _
    $region13: #{tpu_custom_call.1} parent=1 // pred_fallthru
      _
    // Predicated region
    $region14: #{tpu_custom_call.1} parent=1 // pred_check
      _
    $region15: #{tpu_custom_call.1} parent=1 // pred_check_branch
      %20 = sbr.rel (0) target = $region17
    $region16: #{tpu_custom_call.1} parent=1 // pred_region
      _
    $region17: #{tpu_custom_call.1} parent=1 // pred_fallthru
      _
    // Predicated region
    $region18: #{tpu_custom_call.1} parent=1 // pred_check
      _
    $region19: #{tpu_custom_call.1} parent=1 // pred_check_branch
      %22 = sbr.rel (0) target = $region21
    $region20: #{tpu_custom_call.1} parent=1 // pred_region
      _
    $region21: #{tpu_custom_call.1} parent=1 // pred_fallthru
      _
    // Predicated region
    $region22: #{tpu_custom_call.1} parent=1 // pred_check
      _
    $region23: #{tpu_custom_call.1} parent=1 // pred_check_branch
      %24 = sbr.rel (0) target = $region25
    $region24: #{tpu_custom_call.1} parent=1 // pred_region
      _
    $region25: #{tpu_custom_call.1} parent=1 // pred_fallthru
      _
    // Predicated region
    $region26: #{tpu_custom_call.1} parent=1 // pred_check
      _
    $region27: #{tpu_custom_call.1} parent=1 // pred_check_branch
      %26 = sbr.rel (0) target = $region29
    $region28: #{tpu_custom_call.1} parent=1 // pred_region
      _
    $region29: #{tpu_custom_call.1} parent=1 // pred_fallthru
      _
    %v27 = vld [vmem:[%s0] sm:$0xff]
    %v28 = vld [vmem:[%s0 + $0x8] sm:$0xff]
    %v29 = vld [vmem:[%s0 + $0x10] sm:$0xff]
    %v30 = vld [vmem:[%s0 + $0x18] sm:$0xff]
    %v31 = vld [vmem:[%s0 + $0x20] sm:$0xff]
    %v32 = vld [vmem:[%s0 + $0x28] sm:$0xff]
    %v33 = vld [vmem:[%s0 + $0x30] sm:$0xff]
    %v34 = vld [vmem:[%s0 + $0x38] sm:$0xff]
    %v35 = vld [vmem:[%s0 + $0x40] sm:$0xff]
    %v36 = vld [vmem:[%s0 + $0x48] sm:$0xff]
    %v37 = vld [vmem:[%s0 + $0x50] sm:$0xff]
    %v38 = vld [vmem:[%s0 + $0x58] sm:$0xff]
    %v39 = vld [vmem:[%s0 + $0x60] sm:$0xff]
    %v40 = vld [vmem:[%s0 + $0x68] sm:$0xff]
    %v41 = vld [vmem:[%s0 + $0x70] sm:$0xff]
    %v42 = vld [vmem:[%s0 + $0x78] sm:$0xff]
    %v43 = vld [vmem:[%s1] sm:$0xff]
    %v44 = vld [vmem:[%s1 + $0x8] sm:$0xff]
    %v45 = vld [vmem:[%s2] sm:$0x1]
    %v47 = vlaneseq
    %v48 = vshrl.u32 %v47, 7
    %v49 = vsub.s32 0, %v48
    %v50 = vrot.slane %v45, %v49
    %vm52 = vcmask 130048
    %v54 = vsel %vm52, %v27, 0
    %v57 = vsel %vm52, %v28, 0
    %v60 = vsel %vm52, %v29, 0
    %v63 = vsel %vm52, %v30, 0
    %v66 = vsel %vm52, %v31, 0
    %v69 = vsel %vm52, %v32, 0
    %v72 = vsel %vm52, %v33, 0
    %v75 = vsel %vm52, %v34, 0
    %v78 = vsel %vm52, %v35, 0
    %v81 = vsel %vm52, %v36, 0
    %v84 = vsel %vm52, %v37, 0
    %v87 = vsel %vm52, %v38, 0
    %v90 = vsel %vm52, %v39, 0
    %v93 = vsel %vm52, %v40, 0
    %v96 = vsel %vm52, %v41, 0
    %v99 = vsel %vm52, %v42, 0
    %101 = vmatprep.subr.mxu0 0.0
    %102 = vmatpush1.msra.mxu0 0.0
    %103 = vmatprep.subr.mxu0 0.0
    %104 = vmatpush1.msra.mxu0 0.0
    %105 = vmatprep.subr.mxu0 0.0
    %106 = vmatpush1.msra.mxu0 0.0
    %107 = vmatprep.subr.mxu0 0.0
    %108 = vmatpush1.msra.mxu0 0.0
    %109 = vmatprep.subr.mxu0 0.0
    %110 = vmatpush1.msra.mxu0 0.0
    %111 = vmatprep.subr.mxu0 0.0
    %112 = vmatpush1.msra.mxu0 0.0
    %113 = vmatprep.subr.mxu0 0.0
    %114 = vmatpush1.msra.mxu0 0.0
    %115 = vmatprep.subr.mxu0 0.0
    %116 = vmatpush1.msra.mxu0 0.0
    %117 = vmatprep.subr.mxu0 0.0
    %118 = vmatpush1.msra.mxu0 0.0
    %119 = vmatprep.subr.mxu0 0.0
    %120 = vmatpush1.msra.mxu0 0.0
    %121 = vmatprep.subr.mxu0 0.0
    %122 = vmatpush1.msra.mxu0 0.0
    %123 = vmatprep.subr.mxu0 0.0
    %124 = vmatpush1.msra.mxu0 0.0
    %125 = vmatprep.subr.mxu0 0.0
    %126 = vmatpush1.msra.mxu0 0.0
    %127 = vmatprep.subr.mxu0 0.0
    %128 = vmatpush1.msra.mxu0 0.0
    %129 = vmatprep.subr.mxu0 0.0
    %130 = vmatpush1.msra.mxu0 %v44
    %131 = vmatprep.subr.mxu0 0.0
    %132 = vmatpush1.msra.mxu0 %v43
    %133 = vmatprep.subr.mxu0 0.0
    %134 = vmatpush2.msra.mxu0 0.0
    %135 = vmatprep.subr.mxu0 0.0
    %136 = vmatpush2.msra.mxu0 0.0
    %137 = vmatprep.subr.mxu0 0.0
    %138 = vmatpush2.msra.mxu0 0.0
    %139 = vmatprep.subr.mxu0 0.0
    %140 = vmatpush2.msra.mxu0 0.0
    %141 = vmatprep.subr.mxu0 0.0
    %142 = vmatpush2.msra.mxu0 0.0
    %143 = vmatprep.subr.mxu0 0.0
    %144 = vmatpush2.msra.mxu0 0.0
    %145 = vmatprep.subr.mxu0 0.0
    %146 = vmatpush2.msra.mxu0 0.0
    %147 = vmatprep.subr.mxu0 0.0
    %148 = vmatpush2.msra.mxu0 0.0
    %149 = vmatprep.subr.mxu0 0.0
    %150 = vmatpush2.msra.mxu0 0.0
    %151 = vmatprep.subr.mxu0 0.0
    %152 = vmatpush2.msra.mxu0 0.0
    %153 = vmatprep.subr.mxu0 0.0
    %154 = vmatpush2.msra.mxu0 0.0
    %155 = vmatprep.subr.mxu0 0.0
    %156 = vmatpush2.msra.mxu0 0.0
    %157 = vmatprep.subr.mxu0 0.0
    %158 = vmatpush2.msra.mxu0 0.0
    %159 = vmatprep.subr.mxu0 0.0
    %160 = vmatpush2.msra.mxu0 0.0
    %161 = vmatprep.subr.mxu0 0.0
    %162 = vmatpush2.msra.mxu0 0.0
    %163 = vmatprep.subr.mxu0 0.0
    %164 = vmatpush2.msra.mxu0 0.0
    %165 = vmatprep.mubr.f32.mxu0 0.0
    %166 = vmatmul.mubr.f32.gmra.mxu0 %v54
    %v167 = vpop.f32.mrf.mxu0
    %v168 = vadd.f32 %v50, %v167
    %v169 = vpop.f32.mrf.mxu0
    %170 = vmatprep.mubr.f32.mxu0 0.0
    %171 = vmatmul.mubr.f32.gmra.mxu0 %v57
    %v172 = vpop.f32.mrf.mxu0
    %v173 = vadd.f32 %v50, %v172
    %v174 = vpop.f32.mrf.mxu0
    %175 = vmatprep.mubr.f32.mxu0 0.0
    %176 = vmatmul.mubr.f32.gmra.mxu0 %v60
    %v177 = vpop.f32.mrf.mxu0
    %v178 = vadd.f32 %v50, %v177
    %v179 = vpop.f32.mrf.mxu0
    %180 = vmatprep.mubr.f32.mxu0 0.0
    %181 = vmatmul.mubr.f32.gmra.mxu0 %v63
    %v182 = vpop.f32.mrf.mxu0
    %v183 = vadd.f32 %v50, %v182
    %v184 = vpop.f32.mrf.mxu0
    %185 = vmatprep.mubr.f32.mxu0 0.0
    %186 = vmatmul.mubr.f32.gmra.mxu0 %v66
    %v187 = vpop.f32.mrf.mxu0
    %v188 = vadd.f32 %v50, %v187
    %v189 = vpop.f32.mrf.mxu0
    %190 = vmatprep.mubr.f32.mxu0 0.0
    %191 = vmatmul.mubr.f32.gmra.mxu0 %v69
    %v192 = vpop.f32.mrf.mxu0
    %v193 = vadd.f32 %v50, %v192
    %v194 = vpop.f32.mrf.mxu0
    %195 = vmatprep.mubr.f32.mxu0 0.0
    %196 = vmatmul.mubr.f32.gmra.mxu0 %v72
    %v197 = vpop.f32.mrf.mxu0
    %v198 = vadd.f32 %v50, %v197
    %v199 = vpop.f32.mrf.mxu0
    %200 = vmatprep.mubr.f32.mxu0 0.0
    %201 = vmatmul.mubr.f32.gmra.mxu0 %v75
    %v202 = vpop.f32.mrf.mxu0
    %v203 = vadd.f32 %v50, %v202
    %v204 = vpop.f32.mrf.mxu0
    %205 = vmatprep.mubr.f32.mxu0 0.0
    %206 = vmatmul.mubr.f32.gmra.mxu0 %v78
    %v207 = vpop.f32.mrf.mxu0
    %v208 = vadd.f32 %v50, %v207
    %v209 = vpop.f32.mrf.mxu0
    %210 = vmatprep.mubr.f32.mxu0 0.0
    %211 = vmatmul.mubr.f32.gmra.mxu0 %v81
    %v212 = vpop.f32.mrf.mxu0
    %v213 = vadd.f32 %v50, %v212
    %v214 = vpop.f32.mrf.mxu0
    %215 = vmatprep.mubr.f32.mxu0 0.0
    %216 = vmatmul.mubr.f32.gmra.mxu0 %v84
    %v217 = vpop.f32.mrf.mxu0
    %v218 = vadd.f32 %v50, %v217
    %v219 = vpop.f32.mrf.mxu0
    %220 = vmatprep.mubr.f32.mxu0 0.0
    %221 = vmatmul.mubr.f32.gmra.mxu0 %v87
    %v222 = vpop.f32.mrf.mxu0
    %v223 = vadd.f32 %v50, %v222
    %v224 = vpop.f32.mrf.mxu0
    %225 = vmatprep.mubr.f32.mxu0 0.0
    %226 = vmatmul.mubr.f32.gmra.mxu0 %v90
    %v227 = vpop.f32.mrf.mxu0
    %v228 = vadd.f32 %v50, %v227
    %v229 = vpop.f32.mrf.mxu0
    %230 = vmatprep.mubr.f32.mxu0 0.0
    %231 = vmatmul.mubr.f32.gmra.mxu0 %v93
    %v232 = vpop.f32.mrf.mxu0
    %v233 = vadd.f32 %v50, %v232
    %v234 = vpop.f32.mrf.mxu0
    %235 = vmatprep.mubr.f32.mxu0 0.0
    %236 = vmatmul.mubr.f32.gmra.mxu0 %v96
    %v237 = vpop.f32.mrf.mxu0
    %v238 = vadd.f32 %v50, %v237
    %v239 = vpop.f32.mrf.mxu0
    %240 = vmatprep.mubr.f32.mxu0 0.0
    %241 = vmatmul.mubr.f32.gmra.mxu0 %v99
    %v242 = vpop.f32.mrf.mxu0
    %v243 = vadd.f32 %v50, %v242
    %v244 = vpop.f32.mrf.mxu0
    %245 = vdwg.mxu0
    %v246 = vlaneseq
    %v247 = vshrl.u32 %v246, 7
    %v248 = vadd.s32 %v247, 8
    %v249 = vadd.s32 %v247, 16
    %v250 = vadd.s32 %v247, 24
    %v251 = vadd.s32 %v247, 32
    %v252 = vadd.s32 %v247, 40
    %v253 = vadd.s32 %v247, 48
    %v254 = vadd.s32 %v247, 56
    %v255 = vadd.s32 %v247, 64
    %v256 = vadd.s32 %v247, 72
    %v257 = vadd.s32 %v247, 80
    %v258 = vadd.s32 %v247, 88
    %v259 = vadd.s32 %v247, 96
    %v260 = vadd.s32 %v247, 104
    %v261 = vadd.s32 %v247, 112
    %v262 = vadd.s32 %v247, 120
    %vm263 = vcmp.lt.s32.totalorder %v247, 0
    %v264 = vsub.s32 0, %v247
    %v265 = vsel %vm263, %v264, %v247
    %v266 = vshrl.u32 %v265, 6
    %v267 = vand.u32 %v265, 63
    %v268 = vsub.s32 0, %v267
    %v269 = vsel %vm263, %v268, %v267
    %vm270 = vcmp.lt.s32.totalorder %v248, 0
    %v271 = vsub.s32 0, %v248
    %v272 = vsel %vm270, %v271, %v248
    %v273 = vshrl.u32 %v272, 6
    %v274 = vand.u32 %v272, 63
    %v275 = vsub.s32 0, %v274
    %v276 = vsel %vm270, %v275, %v274
    %vm277 = vcmp.lt.s32.totalorder %v249, 0
    %v278 = vsub.s32 0, %v249
    %v279 = vsel %vm277, %v278, %v249
    %v280 = vshrl.u32 %v279, 6
    %v281 = vand.u32 %v279, 63
    %v282 = vsub.s32 0, %v281
    %v283 = vsel %vm277, %v282, %v281
    %vm284 = vcmp.lt.s32.totalorder %v250, 0
    %v285 = vsub.s32 0, %v250
    %v286 = vsel %vm284, %v285, %v250
    %v287 = vshrl.u32 %v286, 6
    %v288 = vand.u32 %v286, 63
    %v289 = vsub.s32 0, %v288
    %v290 = vsel %vm284, %v289, %v288
    %vm291 = vcmp.lt.s32.totalorder %v251, 0
    %v292 = vsub.s32 0, %v251
    %v293 = vsel %vm291, %v292, %v251
    %v294 = vshrl.u32 %v293, 6
    %v295 = vand.u32 %v293, 63
    %v296 = vsub.s32 0, %v295
    %v297 = vsel %vm291, %v296, %v295
    %vm298 = vcmp.lt.s32.totalorder %v252, 0
    %v299 = vsub.s32 0, %v252
    %v300 = vsel %vm298, %v299, %v252
    %v301 = vshrl.u32 %v300, 6
    %v302 = vand.u32 %v300, 63
    %v303 = vsub.s32 0, %v302
    %v304 = vsel %vm298, %v303, %v302
    %vm305 = vcmp.lt.s32.totalorder %v253, 0
    %v306 = vsub.s32 0, %v253
    %v307 = vsel %vm305, %v306, %v253
    %v308 = vshrl.u32 %v307, 6
    %v309 = vand.u32 %v307, 63
    %v310 = vsub.s32 0, %v309
    %v311 = vsel %vm305, %v310, %v309
    %vm312 = vcmp.lt.s32.totalorder %v254, 0
    %v313 = vsub.s32 0, %v254
    %v314 = vsel %vm312, %v313, %v254
    %v315 = vshrl.u32 %v314, 6
    %v316 = vand.u32 %v314, 63
    %v317 = vsub.s32 0, %v316
    %v318 = vsel %vm312, %v317, %v316
    %vm319 = vcmp.lt.s32.totalorder %v255, 0
    %v320 = vsub.s32 0, %v255
    %v321 = vsel %vm319, %v320, %v255
    %v322 = vshrl.u32 %v321, 6
    %v323 = vand.u32 %v321, 63
    %v324 = vsub.s32 0, %v323
    %v325 = vsel %vm319, %v324, %v323
    %vm326 = vcmp.lt.s32.totalorder %v256, 0
    %v327 = vsub.s32 0, %v256
    %v328 = vsel %vm326, %v327, %v256
    %v329 = vshrl.u32 %v328, 6
    %v330 = vand.u32 %v328, 63
    %v331 = vsub.s32 0, %v330
    %v332 = vsel %vm326, %v331, %v330
    %vm333 = vcmp.lt.s32.totalorder %v257, 0
    %v334 = vsub.s32 0, %v257
    %v335 = vsel %vm333, %v334, %v257
    %v336 = vshrl.u32 %v335, 6
    %v337 = vand.u32 %v335, 63
    %v338 = vsub.s32 0, %v337
    %v339 = vsel %vm333, %v338, %v337
    %vm340 = vcmp.lt.s32.totalorder %v258, 0
    %v341 = vsub.s32 0, %v258
    %v342 = vsel %vm340, %v341, %v258
    %v343 = vshrl.u32 %v342, 6
    %v344 = vand.u32 %v342, 63
    %v345 = vsub.s32 0, %v344
    %v346 = vsel %vm340, %v345, %v344
    %vm347 = vcmp.lt.s32.totalorder %v259, 0
    %v348 = vsub.s32 0, %v259
    %v349 = vsel %vm347, %v348, %v259
    %v350 = vshrl.u32 %v349, 6
    %v351 = vand.u32 %v349, 63
    %v352 = vsub.s32 0, %v351
    %v353 = vsel %vm347, %v352, %v351
    %vm354 = vcmp.lt.s32.totalorder %v260, 0
    %v355 = vsub.s32 0, %v260
    %v356 = vsel %vm354, %v355, %v260
    %v357 = vshrl.u32 %v356, 6
    %v358 = vand.u32 %v356, 63
    %v359 = vsub.s32 0, %v358
    %v360 = vsel %vm354, %v359, %v358
    %vm361 = vcmp.lt.s32.totalorder %v261, 0
    %v362 = vsub.s32 0, %v261
    %v363 = vsel %vm361, %v362, %v261
    %v364 = vshrl.u32 %v363, 6
    %v365 = vand.u32 %v363, 63
    %v366 = vsub.s32 0, %v365
    %v367 = vsel %vm361, %v366, %v365
    %vm368 = vcmp.lt.s32.totalorder %v262, 0
    %v369 = vsub.s32 0, %v262
    %v370 = vsel %vm368, %v369, %v262
    %v371 = vshrl.u32 %v370, 6
    %v372 = vand.u32 %v370, 63
    %v373 = vsub.s32 0, %v372
    %v374 = vsel %vm368, %v373, %v372
    %vm375 = vcmp.ne.s32.totalorder %v269, 0
    %vm376 = vcmp.ne.s32.totalorder %v276, 0
    %vm377 = vcmp.ne.s32.totalorder %v283, 0
    %vm378 = vcmp.ne.s32.totalorder %v290, 0
    %vm379 = vcmp.ne.s32.totalorder %v297, 0
    %vm380 = vcmp.ne.s32.totalorder %v304, 0
    %vm381 = vcmp.ne.s32.totalorder %v311, 0
    %vm382 = vcmp.ne.s32.totalorder %v318, 0
    %vm383 = vcmp.ne.s32.totalorder %v325, 0
    %vm384 = vcmp.ne.s32.totalorder %v332, 0
    %vm385 = vcmp.ne.s32.totalorder %v339, 0
    %vm386 = vcmp.ne.s32.totalorder %v346, 0
    %vm387 = vcmp.ne.s32.totalorder %v353, 0
    %vm388 = vcmp.ne.s32.totalorder %v360, 0
    %vm389 = vcmp.ne.s32.totalorder %v367, 0
    %vm390 = vcmp.ne.s32.totalorder %v374, 0
    %vm391 = vcmp.lt.s32.totalorder %v269, 0
    %vm392 = vcmp.lt.s32.totalorder %v276, 0
    %vm393 = vcmp.lt.s32.totalorder %v283, 0
    %vm394 = vcmp.lt.s32.totalorder %v290, 0
    %vm395 = vcmp.lt.s32.totalorder %v297, 0
    %vm396 = vcmp.lt.s32.totalorder %v304, 0
    %vm397 = vcmp.lt.s32.totalorder %v311, 0
    %vm398 = vcmp.lt.s32.totalorder %v318, 0
    %vm399 = vcmp.lt.s32.totalorder %v325, 0
    %vm400 = vcmp.lt.s32.totalorder %v332, 0
    %vm401 = vcmp.lt.s32.totalorder %v339, 0
    %vm402 = vcmp.lt.s32.totalorder %v346, 0
    %vm403 = vcmp.lt.s32.totalorder %v353, 0
    %vm404 = vcmp.lt.s32.totalorder %v360, 0
    %vm405 = vcmp.lt.s32.totalorder %v367, 0
    %vm406 = vcmp.lt.s32.totalorder %v374, 0
    %vm407 = vmand %vm391, %vm375
    %vm408 = vmand %vm392, %vm376
    %vm409 = vmand %vm393, %vm377
    %vm410 = vmand %vm394, %vm378
    %vm411 = vmand %vm395, %vm379
    %vm412 = vmand %vm396, %vm380
    %vm413 = vmand %vm397, %vm381
    %vm414 = vmand %vm398, %vm382
    %vm415 = vmand %vm399, %vm383
    %vm416 = vmand %vm400, %vm384
    %vm417 = vmand %vm401, %vm385
    %vm418 = vmand %vm402, %vm386
    %vm419 = vmand %vm403, %vm387
    %vm420 = vmand %vm404, %vm388
    %vm421 = vmand %vm405, %vm389
    %vm422 = vmand %vm406, %vm390
    %v423 = vadd.s32 %v269, 64
    %v424 = vadd.s32 %v276, 64
    %v425 = vadd.s32 %v283, 64
    %v426 = vadd.s32 %v290, 64
    %v427 = vadd.s32 %v297, 64
    %v428 = vadd.s32 %v304, 64
    %v429 = vadd.s32 %v311, 64
    %v430 = vadd.s32 %v318, 64
    %v431 = vadd.s32 %v325, 64
    %v432 = vadd.s32 %v332, 64
    %v433 = vadd.s32 %v339, 64
    %v434 = vadd.s32 %v346, 64
    %v435 = vadd.s32 %v353, 64
    %v436 = vadd.s32 %v360, 64
    %v437 = vadd.s32 %v367, 64
    %v438 = vadd.s32 %v374, 64
    %v439 = vsel %vm407, %v423, %v269
    %v440 = vsel %vm408, %v424, %v276
    %v441 = vsel %vm409, %v425, %v283
    %v442 = vsel %vm410, %v426, %v290
    %v443 = vsel %vm411, %v427, %v297
    %v444 = vsel %vm412, %v428, %v304
    %v445 = vsel %vm413, %v429, %v311
    %v446 = vsel %vm414, %v430, %v318
    %v447 = vsel %vm415, %v431, %v325
    %v448 = vsel %vm416, %v432, %v332
    %v449 = vsel %vm417, %v433, %v339
    %v450 = vsel %vm418, %v434, %v346
    %v451 = vsel %vm419, %v435, %v353
    %v452 = vsel %vm420, %v436, %v360
    %v453 = vsel %vm421, %v437, %v367
    %v454 = vsel %vm422, %v438, %v374
    %vm455 = vcmp.lt.s32.totalorder %v439, 0
    %v456 = vsub.s32 0, %v439
    %v457 = vsel %vm455, %v456, %v439
    %v458 = vshrl.u32 %v457, 3
    %v459 = vand.u32 %v457, 7
    %v460 = vsub.s32 0, %v459
    %v461 = vsel %vm455, %v460, %v459
    %vm462 = vcmp.lt.s32.totalorder %v440, 0
    %v463 = vsub.s32 0, %v440
    %v464 = vsel %vm462, %v463, %v440
    %v465 = vshrl.u32 %v464, 3
    %v466 = vand.u32 %v464, 7
    %v467 = vsub.s32 0, %v466
    %v468 = vsel %vm462, %v467, %v466
    %vm469 = vcmp.lt.s32.totalorder %v441, 0
    %v470 = vsub.s32 0, %v441
    %v471 = vsel %vm469, %v470, %v441
    %v472 = vshrl.u32 %v471, 3
    %v473 = vand.u32 %v471, 7
    %v474 = vsub.s32 0, %v473
    %v475 = vsel %vm469, %v474, %v473
    %vm476 = vcmp.lt.s32.totalorder %v442, 0
    %v477 = vsub.s32 0, %v442
    %v478 = vsel %vm476, %v477, %v442
    %v479 = vshrl.u32 %v478, 3
    %v480 = vand.u32 %v478, 7
    %v481 = vsub.s32 0, %v480
    %v482 = vsel %vm476, %v481, %v480
    %vm483 = vcmp.lt.s32.totalorder %v443, 0
    %v484 = vsub.s32 0, %v443
    %v485 = vsel %vm483, %v484, %v443
    %v486 = vshrl.u32 %v485, 3
    %v487 = vand.u32 %v485, 7
    %v488 = vsub.s32 0, %v487
    %v489 = vsel %vm483, %v488, %v487
    %vm490 = vcmp.lt.s32.totalorder %v444, 0
    %v491 = vsub.s32 0, %v444
    %v492 = vsel %vm490, %v491, %v444
    %v493 = vshrl.u32 %v492, 3
    %v494 = vand.u32 %v492, 7
    %v495 = vsub.s32 0, %v494
    %v496 = vsel %vm490, %v495, %v494
    %vm497 = vcmp.lt.s32.totalorder %v445, 0
    %v498 = vsub.s32 0, %v445
    %v499 = vsel %vm497, %v498, %v445
    %v500 = vshrl.u32 %v499, 3
    %v501 = vand.u32 %v499, 7
    %v502 = vsub.s32 0, %v501
    %v503 = vsel %vm497, %v502, %v501
    %vm504 = vcmp.lt.s32.totalorder %v446, 0
    %v505 = vsub.s32 0, %v446
    %v506 = vsel %vm504, %v505, %v446
    %v507 = vshrl.u32 %v506, 3
    %v508 = vand.u32 %v506, 7
    %v509 = vsub.s32 0, %v508
    %v510 = vsel %vm504, %v509, %v508
    %vm511 = vcmp.lt.s32.totalorder %v447, 0
    %v512 = vsub.s32 0, %v447
    %v513 = vsel %vm511, %v512, %v447
    %v514 = vshrl.u32 %v513, 3
    %v515 = vand.u32 %v513, 7
    %v516 = vsub.s32 0, %v515
    %v517 = vsel %vm511, %v516, %v515
    %vm518 = vcmp.lt.s32.totalorder %v448, 0
    %v519 = vsub.s32 0, %v448
    %v520 = vsel %vm518, %v519, %v448
    %v521 = vshrl.u32 %v520, 3
    %v522 = vand.u32 %v520, 7
    %v523 = vsub.s32 0, %v522
    %v524 = vsel %vm518, %v523, %v522
    %vm525 = vcmp.lt.s32.totalorder %v449, 0
    %v526 = vsub.s32 0, %v449
    %v527 = vsel %vm525, %v526, %v449
    %v528 = vshrl.u32 %v527, 3
    %v529 = vand.u32 %v527, 7
    %v530 = vsub.s32 0, %v529
    %v531 = vsel %vm525, %v530, %v529
    %vm532 = vcmp.lt.s32.totalorder %v450, 0
    %v533 = vsub.s32 0, %v450
    %v534 = vsel %vm532, %v533, %v450
    %v535 = vshrl.u32 %v534, 3
    %v536 = vand.u32 %v534, 7
    %v537 = vsub.s32 0, %v536
    %v538 = vsel %vm532, %v537, %v536
    %vm539 = vcmp.lt.s32.totalorder %v451, 0
    %v540 = vsub.s32 0, %v451
    %v541 = vsel %vm539, %v540, %v451
    %v542 = vshrl.u32 %v541, 3
    %v543 = vand.u32 %v541, 7
    %v544 = vsub.s32 0, %v543
    %v545 = vsel %vm539, %v544, %v543
    %vm546 = vcmp.lt.s32.totalorder %v452, 0
    %v547 = vsub.s32 0, %v452
    %v548 = vsel %vm546, %v547, %v452
    %v549 = vshrl.u32 %v548, 3
    %v550 = vand.u32 %v548, 7
    %v551 = vsub.s32 0, %v550
    %v552 = vsel %vm546, %v551, %v550
    %vm553 = vcmp.lt.s32.totalorder %v453, 0
    %v554 = vsub.s32 0, %v453
    %v555 = vsel %vm553, %v554, %v453
    %v556 = vshrl.u32 %v555, 3
    %v557 = vand.u32 %v555, 7
    %v558 = vsub.s32 0, %v557
    %v559 = vsel %vm553, %v558, %v557
    %vm560 = vcmp.lt.s32.totalorder %v454, 0
    %v561 = vsub.s32 0, %v454
    %v562 = vsel %vm560, %v561, %v454
    %v563 = vshrl.u32 %v562, 3
    %v564 = vand.u32 %v562, 7
    %v565 = vsub.s32 0, %v564
    %v566 = vsel %vm560, %v565, %v564
    %vm567 = vcmp.ne.s32.totalorder %v461, 0
    %vm568 = vcmp.ne.s32.totalorder %v468, 0
    %vm569 = vcmp.ne.s32.totalorder %v475, 0
    %vm570 = vcmp.ne.s32.totalorder %v482, 0
    %vm571 = vcmp.ne.s32.totalorder %v489, 0
    %vm572 = vcmp.ne.s32.totalorder %v496, 0
    %vm573 = vcmp.ne.s32.totalorder %v503, 0
    %vm574 = vcmp.ne.s32.totalorder %v510, 0
    %vm575 = vcmp.ne.s32.totalorder %v517, 0
    %vm576 = vcmp.ne.s32.totalorder %v524, 0
    %vm577 = vcmp.ne.s32.totalorder %v531, 0
    %vm578 = vcmp.ne.s32.totalorder %v538, 0
    %vm579 = vcmp.ne.s32.totalorder %v545, 0
    %vm580 = vcmp.ne.s32.totalorder %v552, 0
    %vm581 = vcmp.ne.s32.totalorder %v559, 0
    %vm582 = vcmp.ne.s32.totalorder %v566, 0
    %vm583 = vcmp.lt.s32.totalorder %v461, 0
    %vm584 = vcmp.lt.s32.totalorder %v468, 0
    %vm585 = vcmp.lt.s32.totalorder %v475, 0
    %vm586 = vcmp.lt.s32.totalorder %v482, 0
    %vm587 = vcmp.lt.s32.totalorder %v489, 0
    %vm588 = vcmp.lt.s32.totalorder %v496, 0
    %vm589 = vcmp.lt.s32.totalorder %v503, 0
    %vm590 = vcmp.lt.s32.totalorder %v510, 0
    %vm591 = vcmp.lt.s32.totalorder %v517, 0
    %vm592 = vcmp.lt.s32.totalorder %v524, 0
    %vm593 = vcmp.lt.s32.totalorder %v531, 0
    %vm594 = vcmp.lt.s32.totalorder %v538, 0
    %vm595 = vcmp.lt.s32.totalorder %v545, 0
    %vm596 = vcmp.lt.s32.totalorder %v552, 0
    %vm597 = vcmp.lt.s32.totalorder %v559, 0
    %vm598 = vcmp.lt.s32.totalorder %v566, 0
    %vm599 = vmand %vm583, %vm567
    %vm600 = vmand %vm584, %vm568
    %vm601 = vmand %vm585, %vm569
    %vm602 = vmand %vm586, %vm570
    %vm603 = vmand %vm587, %vm571
    %vm604 = vmand %vm588, %vm572
    %vm605 = vmand %vm589, %vm573
    %vm606 = vmand %vm590, %vm574
    %vm607 = vmand %vm591, %vm575
    %vm608 = vmand %vm592, %vm576
    %vm609 = vmand %vm593, %vm577
    %vm610 = vmand %vm594, %vm578
    %vm611 = vmand %vm595, %vm579
    %vm612 = vmand %vm596, %vm580
    %vm613 = vmand %vm597, %vm581
    %vm614 = vmand %vm598, %vm582
    %v615 = vadd.s32 %v461, 8
    %v616 = vadd.s32 %v468, 8
    %v617 = vadd.s32 %v475, 8
    %v618 = vadd.s32 %v482, 8
    %v619 = vadd.s32 %v489, 8
    %v620 = vadd.s32 %v496, 8
    %v621 = vadd.s32 %v503, 8
    %v622 = vadd.s32 %v510, 8
    %v623 = vadd.s32 %v517, 8
    %v624 = vadd.s32 %v524, 8
    %v625 = vadd.s32 %v531, 8
    %v626 = vadd.s32 %v538, 8
    %v627 = vadd.s32 %v545, 8
    %v628 = vadd.s32 %v552, 8
    %v629 = vadd.s32 %v559, 8
    %v630 = vadd.s32 %v566, 8
    %v631 = vsel %vm599, %v615, %v461
    %v632 = vsel %vm600, %v616, %v468
    %v633 = vsel %vm601, %v617, %v475
    %v634 = vsel %vm602, %v618, %v482
    %v635 = vsel %vm603, %v619, %v489
    %v636 = vsel %vm604, %v620, %v496
    %v637 = vsel %vm605, %v621, %v503
    %v638 = vsel %vm606, %v622, %v510
    %v639 = vsel %vm607, %v623, %v517
    %v640 = vsel %vm608, %v624, %v524
    %v641 = vsel %vm609, %v625, %v531
    %v642 = vsel %vm610, %v626, %v538
    %v643 = vsel %vm611, %v627, %v545
    %v644 = vsel %vm612, %v628, %v552
    %v645 = vsel %vm613, %v629, %v559
    %v646 = vsel %vm614, %v630, %v566
    %vm647 = vcmp.ge.s32.totalorder %v439, 8
    %vm648 = vcmp.ge.s32.totalorder %v440, 8
    %vm649 = vcmp.ge.s32.totalorder %v441, 8
    %vm650 = vcmp.ge.s32.totalorder %v442, 8
    %vm651 = vcmp.ge.s32.totalorder %v443, 8
    %vm652 = vcmp.ge.s32.totalorder %v444, 8
    %vm653 = vcmp.ge.s32.totalorder %v445, 8
    %vm654 = vcmp.ge.s32.totalorder %v446, 8
    %vm655 = vcmp.ge.s32.totalorder %v447, 8
    %vm656 = vcmp.ge.s32.totalorder %v448, 8
    %vm657 = vcmp.ge.s32.totalorder %v449, 8
    %vm658 = vcmp.ge.s32.totalorder %v450, 8
    %vm659 = vcmp.ge.s32.totalorder %v451, 8
    %vm660 = vcmp.ge.s32.totalorder %v452, 8
    %vm661 = vcmp.ge.s32.totalorder %v453, 8
    %vm662 = vcmp.ge.s32.totalorder %v454, 8
    %v663 = vsel %vm647, 1, 0
    %v664 = vsel %vm648, 1, 0
    %v665 = vsel %vm649, 1, 0
    %v666 = vsel %vm650, 1, 0
    %v667 = vsel %vm651, 1, 0
    %v668 = vsel %vm652, 1, 0
    %v669 = vsel %vm653, 1, 0
    %v670 = vsel %vm654, 1, 0
    %v671 = vsel %vm655, 1, 0
    %v672 = vsel %vm656, 1, 0
    %v673 = vsel %vm657, 1, 0
    %v674 = vsel %vm658, 1, 0
    %v675 = vsel %vm659, 1, 0
    %v676 = vsel %vm660, 1, 0
    %v677 = vsel %vm661, 1, 0
    %v678 = vsel %vm662, 1, 0
    %v679 = vcvt.s32.f32 %v663
    %v680 = vcvt.s32.f32 %v664
    %v681 = vcvt.s32.f32 %v665
    %v682 = vcvt.s32.f32 %v666
    %v683 = vcvt.s32.f32 %v667
    %v684 = vcvt.s32.f32 %v668
    %v685 = vcvt.s32.f32 %v669
    %v686 = vcvt.s32.f32 %v670
    %v687 = vcvt.s32.f32 %v671
    %v688 = vcvt.s32.f32 %v672
    %v689 = vcvt.s32.f32 %v673
    %v690 = vcvt.s32.f32 %v674
    %v691 = vcvt.s32.f32 %v675
    %v692 = vcvt.s32.f32 %v676
    %v693 = vcvt.s32.f32 %v677
    %v694 = vcvt.s32.f32 %v678
    %vm695 = vcmp.lt.s32.totalorder %v439, 56
    %vm696 = vcmp.lt.s32.totalorder %v440, 56
    %vm697 = vcmp.lt.s32.totalorder %v441, 56
    %vm698 = vcmp.lt.s32.totalorder %v442, 56
    %vm699 = vcmp.lt.s32.totalorder %v443, 56
    %vm700 = vcmp.lt.s32.totalorder %v444, 56
    %vm701 = vcmp.lt.s32.totalorder %v445, 56
    %vm702 = vcmp.lt.s32.totalorder %v446, 56
    %vm703 = vcmp.lt.s32.totalorder %v447, 56
    %vm704 = vcmp.lt.s32.totalorder %v448, 56
    %vm705 = vcmp.lt.s32.totalorder %v449, 56
    %vm706 = vcmp.lt.s32.totalorder %v450, 56
    %vm707 = vcmp.lt.s32.totalorder %v451, 56
    %vm708 = vcmp.lt.s32.totalorder %v452, 56
    %vm709 = vcmp.lt.s32.totalorder %v453, 56
    %vm710 = vcmp.lt.s32.totalorder %v454, 56
    %v711 = vsel %vm695, 1, 0
    %v712 = vsel %vm696, 1, 0
    %v713 = vsel %vm697, 1, 0
    %v714 = vsel %vm698, 1, 0
    %v715 = vsel %vm699, 1, 0
    %v716 = vsel %vm700, 1, 0
    %v717 = vsel %vm701, 1, 0
    %v718 = vsel %vm702, 1, 0
    %v719 = vsel %vm703, 1, 0
    %v720 = vsel %vm704, 1, 0
    %v721 = vsel %vm705, 1, 0
    %v722 = vsel %vm706, 1, 0
    %v723 = vsel %vm707, 1, 0
    %v724 = vsel %vm708, 1, 0
    %v725 = vsel %vm709, 1, 0
    %v726 = vsel %vm710, 1, 0
    %v727 = vcvt.s32.f32 %v711
    %v728 = vcvt.s32.f32 %v712
    %v729 = vcvt.s32.f32 %v713
    %v730 = vcvt.s32.f32 %v714
    %v731 = vcvt.s32.f32 %v715
    %v732 = vcvt.s32.f32 %v716
    %v733 = vcvt.s32.f32 %v717
    %v734 = vcvt.s32.f32 %v718
    %v735 = vcvt.s32.f32 %v719
    %v736 = vcvt.s32.f32 %v720
    %v737 = vcvt.s32.f32 %v721
    %v738 = vcvt.s32.f32 %v722
    %v739 = vcvt.s32.f32 %v723
    %v740 = vcvt.s32.f32 %v724
    %v741 = vcvt.s32.f32 %v725
    %v742 = vcvt.s32.f32 %v726
    %vm743 = vcmp.ge.s32.totalorder %v631, 1
    %vm744 = vcmp.ge.s32.totalorder %v632, 1
    %vm745 = vcmp.ge.s32.totalorder %v633, 1
    %vm746 = vcmp.ge.s32.totalorder %v634, 1
    %vm747 = vcmp.ge.s32.totalorder %v635, 1
    %vm748 = vcmp.ge.s32.totalorder %v636, 1
    %vm749 = vcmp.ge.s32.totalorder %v637, 1
    %vm750 = vcmp.ge.s32.totalorder %v638, 1
    %vm751 = vcmp.ge.s32.totalorder %v639, 1
    %vm752 = vcmp.ge.s32.totalorder %v640, 1
    %vm753 = vcmp.ge.s32.totalorder %v641, 1
    %vm754 = vcmp.ge.s32.totalorder %v642, 1
    %vm755 = vcmp.ge.s32.totalorder %v643, 1
    %vm756 = vcmp.ge.s32.totalorder %v644, 1
    %vm757 = vcmp.ge.s32.totalorder %v645, 1
    %vm758 = vcmp.ge.s32.totalorder %v646, 1
    %v759 = vsel %vm743, 1, 0
    %v760 = vsel %vm744, 1, 0
    %v761 = vsel %vm745, 1, 0
    %v762 = vsel %vm746, 1, 0
    %v763 = vsel %vm747, 1, 0
    %v764 = vsel %vm748, 1, 0
    %v765 = vsel %vm749, 1, 0
    %v766 = vsel %vm750, 1, 0
    %v767 = vsel %vm751, 1, 0
    %v768 = vsel %vm752, 1, 0
    %v769 = vsel %vm753, 1, 0
    %v770 = vsel %vm754, 1, 0
    %v771 = vsel %vm755, 1, 0
    %v772 = vsel %vm756, 1, 0
    %v773 = vsel %vm757, 1, 0
    %v774 = vsel %vm758, 1, 0
    %v775 = vcvt.s32.f32 %v759
    %v776 = vcvt.s32.f32 %v760
    %v777 = vcvt.s32.f32 %v761
    %v778 = vcvt.s32.f32 %v762
    %v779 = vcvt.s32.f32 %v763
    %v780 = vcvt.s32.f32 %v764
    %v781 = vcvt.s32.f32 %v765
    %v782 = vcvt.s32.f32 %v766
    %v783 = vcvt.s32.f32 %v767
    %v784 = vcvt.s32.f32 %v768
    %v785 = vcvt.s32.f32 %v769
    %v786 = vcvt.s32.f32 %v770
    %v787 = vcvt.s32.f32 %v771
    %v788 = vcvt.s32.f32 %v772
    %v789 = vcvt.s32.f32 %v773
    %v790 = vcvt.s32.f32 %v774
    %vm791 = vcmp.le.s32.totalorder %v631, 6
    %vm792 = vcmp.le.s32.totalorder %v632, 6
    %vm793 = vcmp.le.s32.totalorder %v633, 6
    %vm794 = vcmp.le.s32.totalorder %v634, 6
    %vm795 = vcmp.le.s32.totalorder %v635, 6
    %vm796 = vcmp.le.s32.totalorder %v636, 6
    %vm797 = vcmp.le.s32.totalorder %v637, 6
    %vm798 = vcmp.le.s32.totalorder %v638, 6
    %vm799 = vcmp.le.s32.totalorder %v639, 6
    %vm800 = vcmp.le.s32.totalorder %v640, 6
    %vm801 = vcmp.le.s32.totalorder %v641, 6
    %vm802 = vcmp.le.s32.totalorder %v642, 6
    %vm803 = vcmp.le.s32.totalorder %v643, 6
    %vm804 = vcmp.le.s32.totalorder %v644, 6
    %vm805 = vcmp.le.s32.totalorder %v645, 6
    %vm806 = vcmp.le.s32.totalorder %v646, 6
    %v807 = vsel %vm791, 1, 0
    %v808 = vsel %vm792, 1, 0
    %v809 = vsel %vm793, 1, 0
    %v810 = vsel %vm794, 1, 0
    %v811 = vsel %vm795, 1, 0
    %v812 = vsel %vm796, 1, 0
    %v813 = vsel %vm797, 1, 0
    %v814 = vsel %vm798, 1, 0
    %v815 = vsel %vm799, 1, 0
    %v816 = vsel %vm800, 1, 0
    %v817 = vsel %vm801, 1, 0
    %v818 = vsel %vm802, 1, 0
    %v819 = vsel %vm803, 1, 0
    %v820 = vsel %vm804, 1, 0
    %v821 = vsel %vm805, 1, 0
    %v822 = vsel %vm806, 1, 0
    %v823 = vcvt.s32.f32 %v807
    %v824 = vcvt.s32.f32 %v808
    %v825 = vcvt.s32.f32 %v809
    %v826 = vcvt.s32.f32 %v810
    %v827 = vcvt.s32.f32 %v811
    %v828 = vcvt.s32.f32 %v812
    %v829 = vcvt.s32.f32 %v813
    %v830 = vcvt.s32.f32 %v814
    %v831 = vcvt.s32.f32 %v815
    %v832 = vcvt.s32.f32 %v816
    %v833 = vcvt.s32.f32 %v817
    %v834 = vcvt.s32.f32 %v818
    %v835 = vcvt.s32.f32 %v819
    %v836 = vcvt.s32.f32 %v820
    %v837 = vcvt.s32.f32 %v821
    %v838 = vcvt.s32.f32 %v822
    %v839 = vmul.f32 %v243, %v679
    %v840 = vmul.f32 %v168, %v680
    %v841 = vmul.f32 %v173, %v681
    %v842 = vmul.f32 %v178, %v682
    %v843 = vmul.f32 %v183, %v683
    %v844 = vmul.f32 %v188, %v684
    %v845 = vmul.f32 %v193, %v685
    %v846 = vmul.f32 %v198, %v686
    %v847 = vmul.f32 %v203, %v687
    %v848 = vmul.f32 %v208, %v688
    %v849 = vmul.f32 %v213, %v689
    %v850 = vmul.f32 %v218, %v690
    %v851 = vmul.f32 %v223, %v691
    %v852 = vmul.f32 %v228, %v692
    %v853 = vmul.f32 %v233, %v693
    %v854 = vmul.f32 %v238, %v694
    %v855 = vmul.f32 %v173, %v727
    %v856 = vmul.f32 %v178, %v728
    %v857 = vmul.f32 %v183, %v729
    %v858 = vmul.f32 %v188, %v730
    %v859 = vmul.f32 %v193, %v731
    %v860 = vmul.f32 %v198, %v732
    %v861 = vmul.f32 %v203, %v733
    %v862 = vmul.f32 %v208, %v734
    %v863 = vmul.f32 %v213, %v735
    %v864 = vmul.f32 %v218, %v736
    %v865 = vmul.f32 %v223, %v737
    %v866 = vmul.f32 %v228, %v738
    %v867 = vmul.f32 %v233, %v739
    %v868 = vmul.f32 %v238, %v740
    %v869 = vmul.f32 %v243, %v741
    %v870 = vmul.f32 %v168, %v742
    %v871 = vld [vmem:[%s3] sm:$0x1]
    %v872 = vld [vmem:[%s3 + $0x1] sm:$0x1]
    %v873 = vld [vmem:[%s3 + $0x2] sm:$0x1]
    %v874 = vld [vmem:[%s3 + $0x3] sm:$0x1]
    %v875 = vld [vmem:[%s3 + $0x4] sm:$0x1]
    %v876 = vld [vmem:[%s3 + $0x5] sm:$0x1]
    %v877 = vld [vmem:[%s3 + $0x6] sm:$0x1]
    %v878 = vld [vmem:[%s3 + $0x7] sm:$0x1]
    %v879 = vld [vmem:[%s3 + $0x8] sm:$0x1]
    %v880 = vlaneseq
    %v881 = vshrl.u32 %v880, 7
    %v882 = vsub.s32 0, %v881
    %v883 = vrot.slane %v871, %v882
    %v884 = vmul.f32 %v839, %v883
    %v885 = vmul.f32 %v840, %v883
    %v886 = vmul.f32 %v841, %v883
    %v887 = vmul.f32 %v842, %v883
    %v888 = vmul.f32 %v843, %v883
    %v889 = vmul.f32 %v844, %v883
    %v890 = vmul.f32 %v845, %v883
    %v891 = vmul.f32 %v846, %v883
    %v892 = vmul.f32 %v847, %v883
    %v893 = vmul.f32 %v848, %v883
    %v894 = vmul.f32 %v849, %v883
    %v895 = vmul.f32 %v850, %v883
    %v896 = vmul.f32 %v851, %v883
    %v897 = vmul.f32 %v852, %v883
    %v898 = vmul.f32 %v853, %v883
    %v899 = vmul.f32 %v854, %v883
    %v900 = vlaneseq
    %v901 = vshrl.u32 %v900, 7
    %v902 = vsub.s32 0, %v901
    %v903 = vrot.slane %v874, %v902
    %v904 = vmul.f32 %v168, %v903
    %v905 = vmul.f32 %v173, %v903
    %v906 = vmul.f32 %v178, %v903
    %v907 = vmul.f32 %v183, %v903
    %v908 = vmul.f32 %v188, %v903
    %v909 = vmul.f32 %v193, %v903
    %v910 = vmul.f32 %v198, %v903
    %v911 = vmul.f32 %v203, %v903
    %v912 = vmul.f32 %v208, %v903
    %v913 = vmul.f32 %v213, %v903
    %v914 = vmul.f32 %v218, %v903
    %v915 = vmul.f32 %v223, %v903
    %v916 = vmul.f32 %v228, %v903
    %v917 = vmul.f32 %v233, %v903
    %v918 = vmul.f32 %v238, %v903
    %v919 = vmul.f32 %v243, %v903
    %v920 = vadd.f32 %v884, %v904
    %v921 = vadd.f32 %v885, %v905
    %v922 = vadd.f32 %v886, %v906
    %v923 = vadd.f32 %v887, %v907
    %v924 = vadd.f32 %v888, %v908
    %v925 = vadd.f32 %v889, %v909
    %v926 = vadd.f32 %v890, %v910
    %v927 = vadd.f32 %v891, %v911
    %v928 = vadd.f32 %v892, %v912
    %v929 = vadd.f32 %v893, %v913
    %v930 = vadd.f32 %v894, %v914
    %v931 = vadd.f32 %v895, %v915
    %v932 = vadd.f32 %v896, %v916
    %v933 = vadd.f32 %v897, %v917
    %v934 = vadd.f32 %v898, %v918
    %v935 = vadd.f32 %v899, %v919
    %v936 = vlaneseq
    %v937 = vshrl.u32 %v936, 7
    %v938 = vsub.s32 0, %v937
    %v939 = vrot.slane %v877, %v938
    %v940 = vmul.f32 %v855, %v939
    %v941 = vmul.f32 %v856, %v939
    %v942 = vmul.f32 %v857, %v939
    %v943 = vmul.f32 %v858, %v939
    %v944 = vmul.f32 %v859, %v939
    %v945 = vmul.f32 %v860, %v939
    %v946 = vmul.f32 %v861, %v939
    %v947 = vmul.f32 %v862, %v939
    %v948 = vmul.f32 %v863, %v939
    %v949 = vmul.f32 %v864, %v939
    %v950 = vmul.f32 %v865, %v939
    %v951 = vmul.f32 %v866, %v939
    %v952 = vmul.f32 %v867, %v939
    %v953 = vmul.f32 %v868, %v939
    %v954 = vmul.f32 %v869, %v939
    %v955 = vmul.f32 %v870, %v939
    %v956 = vadd.f32 %v920, %v940
    %v957 = vadd.f32 %v921, %v941
    %v958 = vadd.f32 %v922, %v942
    %v959 = vadd.f32 %v923, %v943
    %v960 = vadd.f32 %v924, %v944
    %v961 = vadd.f32 %v925, %v945
    %v962 = vadd.f32 %v926, %v946
    %v963 = vadd.f32 %v927, %v947
    %v964 = vadd.f32 %v928, %v948
    %v965 = vadd.f32 %v929, %v949
    %v966 = vadd.f32 %v930, %v950
    %v967 = vadd.f32 %v931, %v951
    %v968 = vadd.f32 %v932, %v952
    %v969 = vadd.f32 %v933, %v953
    %v970 = vadd.f32 %v934, %v954
    %v971 = vadd.f32 %v935, %v955
    %v972 = vlaneseq
    %v973 = vshrl.u32 %v972, 7
    %v974 = vsub.s32 0, %v973
    %v975 = vrot.slane %v872, %v974
    %v976 = vmul.f32 %v839, %v975
    %v977 = vmul.f32 %v840, %v975
    %v978 = vmul.f32 %v841, %v975
    %v979 = vmul.f32 %v842, %v975
    %v980 = vmul.f32 %v843, %v975
    %v981 = vmul.f32 %v844, %v975
    %v982 = vmul.f32 %v845, %v975
    %v983 = vmul.f32 %v846, %v975
    %v984 = vmul.f32 %v847, %v975
    %v985 = vmul.f32 %v848, %v975
    %v986 = vmul.f32 %v849, %v975
    %v987 = vmul.f32 %v850, %v975
    %v988 = vmul.f32 %v851, %v975
    %v989 = vmul.f32 %v852, %v975
    %v990 = vmul.f32 %v853, %v975
    %v991 = vmul.f32 %v854, %v975
    %v992 = vlaneseq
    %v993 = vshrl.u32 %v992, 7
    %v994 = vsub.s32 0, %v993
    %v995 = vrot.slane %v875, %v994
    %v996 = vmul.f32 %v168, %v995
    %v997 = vmul.f32 %v173, %v995
    %v998 = vmul.f32 %v178, %v995
    %v999 = vmul.f32 %v183, %v995
    %v1000 = vmul.f32 %v188, %v995
    %v1001 = vmul.f32 %v193, %v995
    %v1002 = vmul.f32 %v198, %v995
    %v1003 = vmul.f32 %v203, %v995
    %v1004 = vmul.f32 %v208, %v995
    %v1005 = vmul.f32 %v213, %v995
    %v1006 = vmul.f32 %v218, %v995
    %v1007 = vmul.f32 %v223, %v995
    %v1008 = vmul.f32 %v228, %v995
    %v1009 = vmul.f32 %v233, %v995
    %v1010 = vmul.f32 %v238, %v995
    %v1011 = vmul.f32 %v243, %v995
    %v1012 = vadd.f32 %v976, %v996
    %v1013 = vadd.f32 %v977, %v997
    %v1014 = vadd.f32 %v978, %v998
    %v1015 = vadd.f32 %v979, %v999
    %v1016 = vadd.f32 %v980, %v1000
    %v1017 = vadd.f32 %v981, %v1001
    %v1018 = vadd.f32 %v982, %v1002
    %v1019 = vadd.f32 %v983, %v1003
    %v1020 = vadd.f32 %v984, %v1004
    %v1021 = vadd.f32 %v985, %v1005
    %v1022 = vadd.f32 %v986, %v1006
    %v1023 = vadd.f32 %v987, %v1007
    %v1024 = vadd.f32 %v988, %v1008
    %v1025 = vadd.f32 %v989, %v1009
    %v1026 = vadd.f32 %v990, %v1010
    %v1027 = vadd.f32 %v991, %v1011
    %v1028 = vlaneseq
    %v1029 = vshrl.u32 %v1028, 7
    %v1030 = vsub.s32 0, %v1029
    %v1031 = vrot.slane %v878, %v1030
    %v1032 = vmul.f32 %v855, %v1031
    %v1033 = vmul.f32 %v856, %v1031
    %v1034 = vmul.f32 %v857, %v1031
    %v1035 = vmul.f32 %v858, %v1031
    %v1036 = vmul.f32 %v859, %v1031
    %v1037 = vmul.f32 %v860, %v1031
    %v1038 = vmul.f32 %v861, %v1031
    %v1039 = vmul.f32 %v862, %v1031
    %v1040 = vmul.f32 %v863, %v1031
    %v1041 = vmul.f32 %v864, %v1031
    %v1042 = vmul.f32 %v865, %v1031
    %v1043 = vmul.f32 %v866, %v1031
    %v1044 = vmul.f32 %v867, %v1031
    %v1045 = vmul.f32 %v868, %v1031
    %v1046 = vmul.f32 %v869, %v1031
    %v1047 = vmul.f32 %v870, %v1031
    %v1048 = vadd.f32 %v1012, %v1032
    %v1049 = vadd.f32 %v1013, %v1033
    %v1050 = vadd.f32 %v1014, %v1034
    %v1051 = vadd.f32 %v1015, %v1035
    %v1052 = vadd.f32 %v1016, %v1036
    %v1053 = vadd.f32 %v1017, %v1037
    %v1054 = vadd.f32 %v1018, %v1038
    %v1055 = vadd.f32 %v1019, %v1039
    %v1056 = vadd.f32 %v1020, %v1040
    %v1057 = vadd.f32 %v1021, %v1041
    %v1058 = vadd.f32 %v1022, %v1042
    %v1059 = vadd.f32 %v1023, %v1043
    %v1060 = vadd.f32 %v1024, %v1044
    %v1061 = vadd.f32 %v1025, %v1045
    %v1062 = vadd.f32 %v1026, %v1046
    %v1063 = vadd.f32 %v1027, %v1047
    %v1064 = vlaneseq
    %v1065 = vshrl.u32 %v1064, 7
    %v1066 = vsub.s32 0, %v1065
    %v1067 = vrot.slane %v873, %v1066
    %v1068 = vmul.f32 %v839, %v1067
    %v1069 = vmul.f32 %v840, %v1067
    %v1070 = vmul.f32 %v841, %v1067
    %v1071 = vmul.f32 %v842, %v1067
    %v1072 = vmul.f32 %v843, %v1067
    %v1073 = vmul.f32 %v844, %v1067
    %v1074 = vmul.f32 %v845, %v1067
    %v1075 = vmul.f32 %v846, %v1067
    %v1076 = vmul.f32 %v847, %v1067
    %v1077 = vmul.f32 %v848, %v1067
    %v1078 = vmul.f32 %v849, %v1067
    %v1079 = vmul.f32 %v850, %v1067
    %v1080 = vmul.f32 %v851, %v1067
    %v1081 = vmul.f32 %v852, %v1067
    %v1082 = vmul.f32 %v853, %v1067
    %v1083 = vmul.f32 %v854, %v1067
    %v1084 = vlaneseq
    %v1085 = vshrl.u32 %v1084, 7
    %v1086 = vsub.s32 0, %v1085
    %v1087 = vrot.slane %v876, %v1086
    %v1088 = vmul.f32 %v168, %v1087
    %v1089 = vmul.f32 %v173, %v1087
    %v1090 = vmul.f32 %v178, %v1087
    %v1091 = vmul.f32 %v183, %v1087
    %v1092 = vmul.f32 %v188, %v1087
    %v1093 = vmul.f32 %v193, %v1087
    %v1094 = vmul.f32 %v198, %v1087
    %v1095 = vmul.f32 %v203, %v1087
    %v1096 = vmul.f32 %v208, %v1087
    %v1097 = vmul.f32 %v213, %v1087
    %v1098 = vmul.f32 %v218, %v1087
    %v1099 = vmul.f32 %v223, %v1087
    %v1100 = vmul.f32 %v228, %v1087
    %v1101 = vmul.f32 %v233, %v1087
    %v1102 = vmul.f32 %v238, %v1087
    %v1103 = vmul.f32 %v243, %v1087
    %v1104 = vadd.f32 %v1068, %v1088
    %v1105 = vadd.f32 %v1069, %v1089
    %v1106 = vadd.f32 %v1070, %v1090
    %v1107 = vadd.f32 %v1071, %v1091
    %v1108 = vadd.f32 %v1072, %v1092
    %v1109 = vadd.f32 %v1073, %v1093
    %v1110 = vadd.f32 %v1074, %v1094
    %v1111 = vadd.f32 %v1075, %v1095
    %v1112 = vadd.f32 %v1076, %v1096
    %v1113 = vadd.f32 %v1077, %v1097
    %v1114 = vadd.f32 %v1078, %v1098
    %v1115 = vadd.f32 %v1079, %v1099
    %v1116 = vadd.f32 %v1080, %v1100
    %v1117 = vadd.f32 %v1081, %v1101
    %v1118 = vadd.f32 %v1082, %v1102
    %v1119 = vadd.f32 %v1083, %v1103
    %v1120 = vlaneseq
    %v1121 = vshrl.u32 %v1120, 7
    %v1122 = vsub.s32 0, %v1121
    %v1123 = vrot.slane %v879, %v1122
    %v1124 = vmul.f32 %v855, %v1123
    %v1125 = vmul.f32 %v856, %v1123
    %v1126 = vmul.f32 %v857, %v1123
    %v1127 = vmul.f32 %v858, %v1123
    %v1128 = vmul.f32 %v859, %v1123
    %v1129 = vmul.f32 %v860, %v1123
    %v1130 = vmul.f32 %v861, %v1123
    %v1131 = vmul.f32 %v862, %v1123
    %v1132 = vmul.f32 %v863, %v1123
    %v1133 = vmul.f32 %v864, %v1123
    %v1134 = vmul.f32 %v865, %v1123
    %v1135 = vmul.f32 %v866, %v1123
    %v1136 = vmul.f32 %v867, %v1123
    %v1137 = vmul.f32 %v868, %v1123
    %v1138 = vmul.f32 %v869, %v1123
    %v1139 = vmul.f32 %v870, %v1123
    %v1140 = vadd.f32 %v1104, %v1124
    %v1141 = vadd.f32 %v1105, %v1125
    %v1142 = vadd.f32 %v1106, %v1126
    %v1143 = vadd.f32 %v1107, %v1127
    %v1144 = vadd.f32 %v1108, %v1128
    %v1145 = vadd.f32 %v1109, %v1129
    %v1146 = vadd.f32 %v1110, %v1130
    %v1147 = vadd.f32 %v1111, %v1131
    %v1148 = vadd.f32 %v1112, %v1132
    %v1149 = vadd.f32 %v1113, %v1133
    %v1150 = vadd.f32 %v1114, %v1134
    %v1151 = vadd.f32 %v1115, %v1135
    %v1152 = vadd.f32 %v1116, %v1136
    %v1153 = vadd.f32 %v1117, %v1137
    %v1154 = vadd.f32 %v1118, %v1138
    %v1155 = vadd.f32 %v1119, %v1139
    %v1156 = vld [vmem:[%s4] sm:$0x1]
    %v1158 = vlaneseq
    %v1159 = vshrl.u32 %v1158, 7
    %v1160 = vsub.s32 0, %v1159
    %v1161 = vrot.slane %v1156, %v1160
    %v1163 = vadd.f32 %v1161, %v1048
    %v1164 = vadd.f32 %v1161, %v1049
    %v1165 = vadd.f32 %v1161, %v1050
    %v1166 = vadd.f32 %v1161, %v1051
    %v1167 = vadd.f32 %v1161, %v1052
    %v1168 = vadd.f32 %v1161, %v1053
    %v1169 = vadd.f32 %v1161, %v1054
    %v1170 = vadd.f32 %v1161, %v1055
    %v1171 = vadd.f32 %v1161, %v1056
    %v1172 = vadd.f32 %v1161, %v1057
    %v1173 = vadd.f32 %v1161, %v1058
    %v1174 = vadd.f32 %v1161, %v1059
    %v1175 = vadd.f32 %v1161, %v1060
    %v1176 = vadd.f32 %v1161, %v1061
    %v1177 = vadd.f32 %v1161, %v1062
    %v1178 = vadd.f32 %v1161, %v1063
    %v1179 = vrot.slane %v956, 7
    %v1180 = vrot.slane %v957, 7
    %v1181 = vrot.slane %v958, 7
    %v1182 = vrot.slane %v959, 7
    %v1183 = vrot.slane %v960, 7
    %v1184 = vrot.slane %v961, 7
    %v1185 = vrot.slane %v962, 7
    %v1186 = vrot.slane %v963, 7
    %v1187 = vrot.slane %v964, 7
    %v1188 = vrot.slane %v965, 7
    %v1189 = vrot.slane %v966, 7
    %v1190 = vrot.slane %v967, 7
    %v1191 = vrot.slane %v968, 7
    %v1192 = vrot.slane %v969, 7
    %v1193 = vrot.slane %v970, 7
    %v1194 = vrot.slane %v971, 7
    %vm1195 = vcmp.lt.s32.totalorder %v247, 1
    %v1196 = vsel %vm1195, %v1193, %v1194
    %v1197 = vsel %vm1195, %v1192, %v1193
    %v1198 = vsel %vm1195, %v1191, %v1192
    %v1199 = vsel %vm1195, %v1190, %v1191
    %v1200 = vsel %vm1195, %v1189, %v1190
    %v1201 = vsel %vm1195, %v1188, %v1189
    %v1202 = vsel %vm1195, %v1187, %v1188
    %v1203 = vsel %vm1195, %v1186, %v1187
    %v1204 = vsel %vm1195, %v1185, %v1186
    %v1205 = vsel %vm1195, %v1184, %v1185
    %v1206 = vsel %vm1195, %v1183, %v1184
    %v1207 = vsel %vm1195, %v1182, %v1183
    %v1208 = vsel %vm1195, %v1181, %v1182
    %v1209 = vsel %vm1195, %v1180, %v1181
    %v1210 = vsel %vm1195, %v1179, %v1180
    %v1211 = vsel %vm1195, %v1194, %v1179
    %v1212 = vmul.f32 %v775, %v1211
    %v1213 = vmul.f32 %v776, %v1210
    %v1214 = vmul.f32 %v777, %v1209
    %v1215 = vmul.f32 %v778, %v1208
    %v1216 = vmul.f32 %v779, %v1207
    %v1217 = vmul.f32 %v780, %v1206
    %v1218 = vmul.f32 %v781, %v1205
    %v1219 = vmul.f32 %v782, %v1204
    %v1220 = vmul.f32 %v783, %v1203
    %v1221 = vmul.f32 %v784, %v1202
    %v1222 = vmul.f32 %v785, %v1201
    %v1223 = vmul.f32 %v786, %v1200
    %v1224 = vmul.f32 %v787, %v1199
    %v1225 = vmul.f32 %v788, %v1198
    %v1226 = vmul.f32 %v789, %v1197
    %v1227 = vmul.f32 %v790, %v1196
    %v1228 = vadd.f32 %v1163, %v1212
    %v1229 = vadd.f32 %v1164, %v1213
    %v1230 = vadd.f32 %v1165, %v1214
    %v1231 = vadd.f32 %v1166, %v1215
    %v1232 = vadd.f32 %v1167, %v1216
    %v1233 = vadd.f32 %v1168, %v1217
    %v1234 = vadd.f32 %v1169, %v1218
    %v1235 = vadd.f32 %v1170, %v1219
    %v1236 = vadd.f32 %v1171, %v1220
    %v1237 = vadd.f32 %v1172, %v1221
    %v1238 = vadd.f32 %v1173, %v1222
    %v1239 = vadd.f32 %v1174, %v1223
    %v1240 = vadd.f32 %v1175, %v1224
    %v1241 = vadd.f32 %v1176, %v1225
    %v1242 = vadd.f32 %v1177, %v1226
    %v1243 = vadd.f32 %v1178, %v1227
    %v1244 = vrot.slane %v1140, 1
    %v1245 = vrot.slane %v1141, 1
    %v1246 = vrot.slane %v1142, 1
    %v1247 = vrot.slane %v1143, 1
    %v1248 = vrot.slane %v1144, 1
    %v1249 = vrot.slane %v1145, 1
    %v1250 = vrot.slane %v1146, 1
    %v1251 = vrot.slane %v1147, 1
    %v1252 = vrot.slane %v1148, 1
    %v1253 = vrot.slane %v1149, 1
    %v1254 = vrot.slane %v1150, 1
    %v1255 = vrot.slane %v1151, 1
    %v1256 = vrot.slane %v1152, 1
    %v1257 = vrot.slane %v1153, 1
    %v1258 = vrot.slane %v1154, 1
    %v1259 = vrot.slane %v1155, 1
    %vm1260 = vcmp.lt.s32.totalorder %v247, 7
    %v1261 = vsel %vm1260, %v1258, %v1259
    %v1262 = vsel %vm1260, %v1257, %v1258
    %v1263 = vsel %vm1260, %v1256, %v1257
    %v1264 = vsel %vm1260, %v1255, %v1256
    %v1265 = vsel %vm1260, %v1254, %v1255
    %v1266 = vsel %vm1260, %v1253, %v1254
    %v1267 = vsel %vm1260, %v1252, %v1253
    %v1268 = vsel %vm1260, %v1251, %v1252
    %v1269 = vsel %vm1260, %v1250, %v1251
    %v1270 = vsel %vm1260, %v1249, %v1250
    %v1271 = vsel %vm1260, %v1248, %v1249
    %v1272 = vsel %vm1260, %v1247, %v1248
    %v1273 = vsel %vm1260, %v1246, %v1247
    %v1274 = vsel %vm1260, %v1245, %v1246
    %v1275 = vsel %vm1260, %v1244, %v1245
    %v1276 = vsel %vm1260, %v1259, %v1244
    %v1277 = vmul.f32 %v823, %v1275
    %v1278 = vmul.f32 %v824, %v1274
    %v1279 = vmul.f32 %v825, %v1273
    %v1280 = vmul.f32 %v826, %v1272
    %v1281 = vmul.f32 %v827, %v1271
    %v1282 = vmul.f32 %v828, %v1270
    %v1283 = vmul.f32 %v829, %v1269
    %v1284 = vmul.f32 %v830, %v1268
    %v1285 = vmul.f32 %v831, %v1267
    %v1286 = vmul.f32 %v832, %v1266
    %v1287 = vmul.f32 %v833, %v1265
    %v1288 = vmul.f32 %v834, %v1264
    %v1289 = vmul.f32 %v835, %v1263
    %v1290 = vmul.f32 %v836, %v1262
    %v1291 = vmul.f32 %v837, %v1261
    %v1292 = vmul.f32 %v838, %v1276
    %v1293 = vadd.f32 %v1228, %v1277
    %v1294 = vadd.f32 %v1229, %v1278
    %v1295 = vadd.f32 %v1230, %v1279
    %v1296 = vadd.f32 %v1231, %v1280
    %v1297 = vadd.f32 %v1232, %v1281
    %v1298 = vadd.f32 %v1233, %v1282
    %v1299 = vadd.f32 %v1234, %v1283
    %v1300 = vadd.f32 %v1235, %v1284
    %v1301 = vadd.f32 %v1236, %v1285
    %v1302 = vadd.f32 %v1237, %v1286
    %v1303 = vadd.f32 %v1238, %v1287
    %v1304 = vadd.f32 %v1239, %v1288
    %v1305 = vadd.f32 %v1240, %v1289
    %v1306 = vadd.f32 %v1241, %v1290
    %v1307 = vadd.f32 %v1242, %v1291
    %v1308 = vadd.f32 %v1243, %v1292
    %v1309 = vmul.f32 %v1293, 0.5
    %v1310 = vmul.f32 %v1294, 0.5
    %v1311 = vmul.f32 %v1295, 0.5
    %v1312 = vmul.f32 %v1296, 0.5
    %v1313 = vmul.f32 %v1297, 0.5
    %v1314 = vmul.f32 %v1298, 0.5
    %v1315 = vmul.f32 %v1299, 0.5
    %v1316 = vmul.f32 %v1300, 0.5
    %v1317 = vmul.f32 %v1301, 0.5
    %v1318 = vmul.f32 %v1302, 0.5
    %v1319 = vmul.f32 %v1303, 0.5
    %v1320 = vmul.f32 %v1304, 0.5
    %v1321 = vmul.f32 %v1305, 0.5
    %v1322 = vmul.f32 %v1306, 0.5
    %v1323 = vmul.f32 %v1307, 0.5
    %v1324 = vmul.f32 %v1308, 0.5
    %v1325 = vmul.f32 %v1293, 0.70710677
    %v1326 = vmul.f32 %v1294, 0.70710677
    %v1327 = vmul.f32 %v1295, 0.70710677
    %v1328 = vmul.f32 %v1296, 0.70710677
    %v1329 = vmul.f32 %v1297, 0.70710677
    %v1330 = vmul.f32 %v1298, 0.70710677
    %v1331 = vmul.f32 %v1299, 0.70710677
    %v1332 = vmul.f32 %v1300, 0.70710677
    %v1333 = vmul.f32 %v1301, 0.70710677
    %v1334 = vmul.f32 %v1302, 0.70710677
    %v1335 = vmul.f32 %v1303, 0.70710677
    %v1336 = vmul.f32 %v1304, 0.70710677
    %v1337 = vmul.f32 %v1305, 0.70710677
    %v1338 = vmul.f32 %v1306, 0.70710677
    %v1339 = vmul.f32 %v1307, 0.70710677
    %v1340 = vmul.f32 %v1308, 0.70710677
    %v1341 = vmax.f32 %v1325, -4.0
    %v1342 = vmax.f32 %v1326, -4.0
    %v1343 = vmax.f32 %v1327, -4.0
    %v1344 = vmax.f32 %v1328, -4.0
    %v1345 = vmax.f32 %v1329, -4.0
    %v1346 = vmax.f32 %v1330, -4.0
    %v1347 = vmax.f32 %v1331, -4.0
    %v1348 = vmax.f32 %v1332, -4.0
    %v1349 = vmax.f32 %v1333, -4.0
    %v1350 = vmax.f32 %v1334, -4.0
    %v1351 = vmax.f32 %v1335, -4.0
    %v1352 = vmax.f32 %v1336, -4.0
    %v1353 = vmax.f32 %v1337, -4.0
    %v1354 = vmax.f32 %v1338, -4.0
    %v1355 = vmax.f32 %v1339, -4.0
    %v1356 = vmax.f32 %v1340, -4.0
    %v1357 = vmin.f32 %v1341, 4.0
    %v1358 = vmin.f32 %v1342, 4.0
    %v1359 = vmin.f32 %v1343, 4.0
    %v1360 = vmin.f32 %v1344, 4.0
    %v1361 = vmin.f32 %v1345, 4.0
    %v1362 = vmin.f32 %v1346, 4.0
    %v1363 = vmin.f32 %v1347, 4.0
    %v1364 = vmin.f32 %v1348, 4.0
    %v1365 = vmin.f32 %v1349, 4.0
    %v1366 = vmin.f32 %v1350, 4.0
    %v1367 = vmin.f32 %v1351, 4.0
    %v1368 = vmin.f32 %v1352, 4.0
    %v1369 = vmin.f32 %v1353, 4.0
    %v1370 = vmin.f32 %v1354, 4.0
    %v1371 = vmin.f32 %v1355, 4.0
    %v1372 = vmin.f32 %v1356, 4.0
    %v1373 = vmul.f32 %v1357, %v1357
    %v1374 = vmul.f32 %v1358, %v1358
    %v1375 = vmul.f32 %v1359, %v1359
    %v1376 = vmul.f32 %v1360, %v1360
    %v1377 = vmul.f32 %v1361, %v1361
    %v1378 = vmul.f32 %v1362, %v1362
    %v1379 = vmul.f32 %v1363, %v1363
    %v1380 = vmul.f32 %v1364, %v1364
    %v1381 = vmul.f32 %v1365, %v1365
    %v1382 = vmul.f32 %v1366, %v1366
    %v1383 = vmul.f32 %v1367, %v1367
    %v1384 = vmul.f32 %v1368, %v1368
    %v1385 = vmul.f32 %v1369, %v1369
    %v1386 = vmul.f32 %v1370, %v1370
    %v1387 = vmul.f32 %v1371, %v1371
    %v1388 = vmul.f32 %v1372, %v1372
    %v1389 = vmul.f32 %v1373, -2.7261424e-10
    %v1390 = vmul.f32 %v1374, -2.7261424e-10
    %v1391 = vmul.f32 %v1375, -2.7261424e-10
    %v1392 = vmul.f32 %v1376, -2.7261424e-10
    %v1393 = vmul.f32 %v1377, -2.7261424e-10
    %v1394 = vmul.f32 %v1378, -2.7261424e-10
    %v1395 = vmul.f32 %v1379, -2.7261424e-10
    %v1396 = vmul.f32 %v1380, -2.7261424e-10
    %v1397 = vmul.f32 %v1381, -2.7261424e-10
    %v1398 = vmul.f32 %v1382, -2.7261424e-10
    %v1399 = vmul.f32 %v1383, -2.7261424e-10
    %v1400 = vmul.f32 %v1384, -2.7261424e-10
    %v1401 = vmul.f32 %v1385, -2.7261424e-10
    %v1402 = vmul.f32 %v1386, -2.7261424e-10
    %v1403 = vmul.f32 %v1387, -2.7261424e-10
    %v1404 = vmul.f32 %v1388, -2.7261424e-10
    %v1405 = vadd.f32 %v1389, 2.7706815e-08
    %v1406 = vadd.f32 %v1390, 2.7706815e-08
    %v1407 = vadd.f32 %v1391, 2.7706815e-08
    %v1408 = vadd.f32 %v1392, 2.7706815e-08
    %v1409 = vadd.f32 %v1393, 2.7706815e-08
    %v1410 = vadd.f32 %v1394, 2.7706815e-08
    %v1411 = vadd.f32 %v1395, 2.7706815e-08
    %v1412 = vadd.f32 %v1396, 2.7706815e-08
    %v1413 = vadd.f32 %v1397, 2.7706815e-08
    %v1414 = vadd.f32 %v1398, 2.7706815e-08
    %v1415 = vadd.f32 %v1399, 2.7706815e-08
    %v1416 = vadd.f32 %v1400, 2.7706815e-08
    %v1417 = vadd.f32 %v1401, 2.7706815e-08
    %v1418 = vadd.f32 %v1402, 2.7706815e-08
    %v1419 = vadd.f32 %v1403, 2.7706815e-08
    %v1420 = vadd.f32 %v1404, 2.7706815e-08
    %v1421 = vmul.f32 %v1405, %v1373
    %v1422 = vmul.f32 %v1406, %v1374
    %v1423 = vmul.f32 %v1407, %v1375
    %v1424 = vmul.f32 %v1408, %v1376
    %v1425 = vmul.f32 %v1409, %v1377
    %v1426 = vmul.f32 %v1410, %v1378
    %v1427 = vmul.f32 %v1411, %v1379
    %v1428 = vmul.f32 %v1412, %v1380
    %v1429 = vmul.f32 %v1413, %v1381
    %v1430 = vmul.f32 %v1414, %v1382
    %v1431 = vmul.f32 %v1415, %v1383
    %v1432 = vmul.f32 %v1416, %v1384
    %v1433 = vmul.f32 %v1417, %v1385
    %v1434 = vmul.f32 %v1418, %v1386
    %v1435 = vmul.f32 %v1419, %v1387
    %v1436 = vmul.f32 %v1420, %v1388
    %v1437 = vadd.f32 %v1421, -2.101024e-06
    %v1438 = vadd.f32 %v1422, -2.101024e-06
    %v1439 = vadd.f32 %v1423, -2.101024e-06
    %v1440 = vadd.f32 %v1424, -2.101024e-06
    %v1441 = vadd.f32 %v1425, -2.101024e-06
    %v1442 = vadd.f32 %v1426, -2.101024e-06
    %v1443 = vadd.f32 %v1427, -2.101024e-06
    %v1444 = vadd.f32 %v1428, -2.101024e-06
    %v1445 = vadd.f32 %v1429, -2.101024e-06
    %v1446 = vadd.f32 %v1430, -2.101024e-06
    %v1447 = vadd.f32 %v1431, -2.101024e-06
    %v1448 = vadd.f32 %v1432, -2.101024e-06
    %v1449 = vadd.f32 %v1433, -2.101024e-06
    %v1450 = vadd.f32 %v1434, -2.101024e-06
    %v1451 = vadd.f32 %v1435, -2.101024e-06
    %v1452 = vadd.f32 %v1436, -2.101024e-06
    %v1453 = vmul.f32 %v1437, %v1373
    %v1454 = vmul.f32 %v1438, %v1374
    %v1455 = vmul.f32 %v1439, %v1375
    %v1456 = vmul.f32 %v1440, %v1376
    %v1457 = vmul.f32 %v1441, %v1377
    %v1458 = vmul.f32 %v1442, %v1378
    %v1459 = vmul.f32 %v1443, %v1379
    %v1460 = vmul.f32 %v1444, %v1380
    %v1461 = vmul.f32 %v1445, %v1381
    %v1462 = vmul.f32 %v1446, %v1382
    %v1463 = vmul.f32 %v1447, %v1383
    %v1464 = vmul.f32 %v1448, %v1384
    %v1465 = vmul.f32 %v1449, %v1385
    %v1466 = vmul.f32 %v1450, %v1386
    %v1467 = vmul.f32 %v1451, %v1387
    %v1468 = vmul.f32 %v1452, %v1388
    %v1469 = vadd.f32 %v1453, -5.6925062e-05
    %v1470 = vadd.f32 %v1454, -5.6925062e-05
    %v1471 = vadd.f32 %v1455, -5.6925062e-05
    %v1472 = vadd.f32 %v1456, -5.6925062e-05
    %v1473 = vadd.f32 %v1457, -5.6925062e-05
    %v1474 = vadd.f32 %v1458, -5.6925062e-05
    %v1475 = vadd.f32 %v1459, -5.6925062e-05
    %v1476 = vadd.f32 %v1460, -5.6925062e-05
    %v1477 = vadd.f32 %v1461, -5.6925062e-05
    %v1478 = vadd.f32 %v1462, -5.6925062e-05
    %v1479 = vadd.f32 %v1463, -5.6925062e-05
    %v1480 = vadd.f32 %v1464, -5.6925062e-05
    %v1481 = vadd.f32 %v1465, -5.6925062e-05
    %v1482 = vadd.f32 %v1466, -5.6925062e-05
    %v1483 = vadd.f32 %v1467, -5.6925062e-05
    %v1484 = vadd.f32 %v1468, -5.6925062e-05
    %v1485 = vmul.f32 %v1469, %v1373
    %v1486 = vmul.f32 %v1470, %v1374
    %v1487 = vmul.f32 %v1471, %v1375
    %v1488 = vmul.f32 %v1472, %v1376
    %v1489 = vmul.f32 %v1473, %v1377
    %v1490 = vmul.f32 %v1474, %v1378
    %v1491 = vmul.f32 %v1475, %v1379
    %v1492 = vmul.f32 %v1476, %v1380
    %v1493 = vmul.f32 %v1477, %v1381
    %v1494 = vmul.f32 %v1478, %v1382
    %v1495 = vmul.f32 %v1479, %v1383
    %v1496 = vmul.f32 %v1480, %v1384
    %v1497 = vmul.f32 %v1481, %v1385
    %v1498 = vmul.f32 %v1482, %v1386
    %v1499 = vmul.f32 %v1483, %v1387
    %v1500 = vmul.f32 %v1484, %v1388
    %v1501 = vadd.f32 %v1485, -0.00073499064
    %v1502 = vadd.f32 %v1486, -0.00073499064
    %v1503 = vadd.f32 %v1487, -0.00073499064
    %v1504 = vadd.f32 %v1488, -0.00073499064
    %v1505 = vadd.f32 %v1489, -0.00073499064
    %v1506 = vadd.f32 %v1490, -0.00073499064
    %v1507 = vadd.f32 %v1491, -0.00073499064
    %v1508 = vadd.f32 %v1492, -0.00073499064
    %v1509 = vadd.f32 %v1493, -0.00073499064
    %v1510 = vadd.f32 %v1494, -0.00073499064
    %v1511 = vadd.f32 %v1495, -0.00073499064
    %v1512 = vadd.f32 %v1496, -0.00073499064
    %v1513 = vadd.f32 %v1497, -0.00073499064
    %v1514 = vadd.f32 %v1498, -0.00073499064
    %v1515 = vadd.f32 %v1499, -0.00073499064
    %v1516 = vadd.f32 %v1500, -0.00073499064
    %v1517 = vmul.f32 %v1501, %v1373
    %v1518 = vmul.f32 %v1502, %v1374
    %v1519 = vmul.f32 %v1503, %v1375
    %v1520 = vmul.f32 %v1504, %v1376
    %v1521 = vmul.f32 %v1505, %v1377
    %v1522 = vmul.f32 %v1506, %v1378
    %v1523 = vmul.f32 %v1507, %v1379
    %v1524 = vmul.f32 %v1508, %v1380
    %v1525 = vmul.f32 %v1509, %v1381
    %v1526 = vmul.f32 %v1510, %v1382
    %v1527 = vmul.f32 %v1511, %v1383
    %v1528 = vmul.f32 %v1512, %v1384
    %v1529 = vmul.f32 %v1513, %v1385
    %v1530 = vmul.f32 %v1514, %v1386
    %v1531 = vmul.f32 %v1515, %v1387
    %v1532 = vmul.f32 %v1516, %v1388
    %v1533 = vadd.f32 %v1517, -0.0029546
    %v1534 = vadd.f32 %v1518, -0.0029546
    %v1535 = vadd.f32 %v1519, -0.0029546
    %v1536 = vadd.f32 %v1520, -0.0029546
    %v1537 = vadd.f32 %v1521, -0.0029546
    %v1538 = vadd.f32 %v1522, -0.0029546
    %v1539 = vadd.f32 %v1523, -0.0029546
    %v1540 = vadd.f32 %v1524, -0.0029546
    %v1541 = vadd.f32 %v1525, -0.0029546
    %v1542 = vadd.f32 %v1526, -0.0029546
    %v1543 = vadd.f32 %v1527, -0.0029546
    %v1544 = vadd.f32 %v1528, -0.0029546
    %v1545 = vadd.f32 %v1529, -0.0029546
    %v1546 = vadd.f32 %v1530, -0.0029546
    %v1547 = vadd.f32 %v1531, -0.0029546
    %v1548 = vadd.f32 %v1532, -0.0029546
    %v1549 = vmul.f32 %v1533, %v1373
    %v1550 = vmul.f32 %v1534, %v1374
    %v1551 = vmul.f32 %v1535, %v1375
    %v1552 = vmul.f32 %v1536, %v1376
    %v1553 = vmul.f32 %v1537, %v1377
    %v1554 = vmul.f32 %v1538, %v1378
    %v1555 = vmul.f32 %v1539, %v1379
    %v1556 = vmul.f32 %v1540, %v1380
    %v1557 = vmul.f32 %v1541, %v1381
    %v1558 = vmul.f32 %v1542, %v1382
    %v1559 = vmul.f32 %v1543, %v1383
    %v1560 = vmul.f32 %v1544, %v1384
    %v1561 = vmul.f32 %v1545, %v1385
    %v1562 = vmul.f32 %v1546, %v1386
    %v1563 = vmul.f32 %v1547, %v1387
    %v1564 = vmul.f32 %v1548, %v1388
    %v1565 = vadd.f32 %v1549, -0.016096033
    %v1566 = vadd.f32 %v1550, -0.016096033
    %v1567 = vadd.f32 %v1551, -0.016096033
    %v1568 = vadd.f32 %v1552, -0.016096033
    %v1569 = vadd.f32 %v1553, -0.016096033
    %v1570 = vadd.f32 %v1554, -0.016096033
    %v1571 = vadd.f32 %v1555, -0.016096033
    %v1572 = vadd.f32 %v1556, -0.016096033
    %v1573 = vadd.f32 %v1557, -0.016096033
    %v1574 = vadd.f32 %v1558, -0.016096033
    %v1575 = vadd.f32 %v1559, -0.016096033
    %v1576 = vadd.f32 %v1560, -0.016096033
    %v1577 = vadd.f32 %v1561, -0.016096033
    %v1578 = vadd.f32 %v1562, -0.016096033
    %v1579 = vadd.f32 %v1563, -0.016096033
    %v1580 = vadd.f32 %v1564, -0.016096033
    %v1581 = vmul.f32 %v1565, %v1357
    %v1582 = vmul.f32 %v1566, %v1358
    %v1583 = vmul.f32 %v1567, %v1359
    %v1584 = vmul.f32 %v1568, %v1360
    %v1585 = vmul.f32 %v1569, %v1361
    %v1586 = vmul.f32 %v1570, %v1362
    %v1587 = vmul.f32 %v1571, %v1363
    %v1588 = vmul.f32 %v1572, %v1364
    %v1589 = vmul.f32 %v1573, %v1365
    %v1590 = vmul.f32 %v1574, %v1366
    %v1591 = vmul.f32 %v1575, %v1367
    %v1592 = vmul.f32 %v1576, %v1368
    %v1593 = vmul.f32 %v1577, %v1369
    %v1594 = vmul.f32 %v1578, %v1370
    %v1595 = vmul.f32 %v1579, %v1371
    %v1596 = vmul.f32 %v1580, %v1372
    %v1597 = vmul.f32 %v1373, -1.45660715e-05
    %v1598 = vmul.f32 %v1374, -1.45660715e-05
    %v1599 = vmul.f32 %v1375, -1.45660715e-05
    %v1600 = vmul.f32 %v1376, -1.45660715e-05
    %v1601 = vmul.f32 %v1377, -1.45660715e-05
    %v1602 = vmul.f32 %v1378, -1.45660715e-05
    %v1603 = vmul.f32 %v1379, -1.45660715e-05
    %v1604 = vmul.f32 %v1380, -1.45660715e-05
    %v1605 = vmul.f32 %v1381, -1.45660715e-05
    %v1606 = vmul.f32 %v1382, -1.45660715e-05
    %v1607 = vmul.f32 %v1383, -1.45660715e-05
    %v1608 = vmul.f32 %v1384, -1.45660715e-05
    %v1609 = vmul.f32 %v1385, -1.45660715e-05
    %v1610 = vmul.f32 %v1386, -1.45660715e-05
    %v1611 = vmul.f32 %v1387, -1.45660715e-05
    %v1612 = vmul.f32 %v1388, -1.45660715e-05
    %v1613 = vadd.f32 %v1597, -0.00021337405
    %v1614 = vadd.f32 %v1598, -0.00021337405
    %v1615 = vadd.f32 %v1599, -0.00021337405
    %v1616 = vadd.f32 %v1600, -0.00021337405
    %v1617 = vadd.f32 %v1601, -0.00021337405
    %v1618 = vadd.f32 %v1602, -0.00021337405
    %v1619 = vadd.f32 %v1603, -0.00021337405
    %v1620 = vadd.f32 %v1604, -0.00021337405
    %v1621 = vadd.f32 %v1605, -0.00021337405
    %v1622 = vadd.f32 %v1606, -0.00021337405
    %v1623 = vadd.f32 %v1607, -0.00021337405
    %v1624 = vadd.f32 %v1608, -0.00021337405
    %v1625 = vadd.f32 %v1609, -0.00021337405
    %v1626 = vadd.f32 %v1610, -0.00021337405
    %v1627 = vadd.f32 %v1611, -0.00021337405
    %v1628 = vadd.f32 %v1612, -0.00021337405
    %v1629 = vmul.f32 %v1613, %v1373
    %v1630 = vmul.f32 %v1614, %v1374
    %v1631 = vmul.f32 %v1615, %v1375
    %v1632 = vmul.f32 %v1616, %v1376
    %v1633 = vmul.f32 %v1617, %v1377
    %v1634 = vmul.f32 %v1618, %v1378
    %v1635 = vmul.f32 %v1619, %v1379
    %v1636 = vmul.f32 %v1620, %v1380
    %v1637 = vmul.f32 %v1621, %v1381
    %v1638 = vmul.f32 %v1622, %v1382
    %v1639 = vmul.f32 %v1623, %v1383
    %v1640 = vmul.f32 %v1624, %v1384
    %v1641 = vmul.f32 %v1625, %v1385
    %v1642 = vmul.f32 %v1626, %v1386
    %v1643 = vmul.f32 %v1627, %v1387
    %v1644 = vmul.f32 %v1628, %v1388
    %v1645 = vadd.f32 %v1629, -0.001682827
    %v1646 = vadd.f32 %v1630, -0.001682827
    %v1647 = vadd.f32 %v1631, -0.001682827
    %v1648 = vadd.f32 %v1632, -0.001682827
    %v1649 = vadd.f32 %v1633, -0.001682827
    %v1650 = vadd.f32 %v1634, -0.001682827
    %v1651 = vadd.f32 %v1635, -0.001682827
    %v1652 = vadd.f32 %v1636, -0.001682827
    %v1653 = vadd.f32 %v1637, -0.001682827
    %v1654 = vadd.f32 %v1638, -0.001682827
    %v1655 = vadd.f32 %v1639, -0.001682827
    %v1656 = vadd.f32 %v1640, -0.001682827
    %v1657 = vadd.f32 %v1641, -0.001682827
    %v1658 = vadd.f32 %v1642, -0.001682827
    %v1659 = vadd.f32 %v1643, -0.001682827
    %v1660 = vadd.f32 %v1644, -0.001682827
    %v1661 = vmul.f32 %v1645, %v1373
    %v1662 = vmul.f32 %v1646, %v1374
    %v1663 = vmul.f32 %v1647, %v1375
    %v1664 = vmul.f32 %v1648, %v1376
    %v1665 = vmul.f32 %v1649, %v1377
    %v1666 = vmul.f32 %v1650, %v1378
    %v1667 = vmul.f32 %v1651, %v1379
    %v1668 = vmul.f32 %v1652, %v1380
    %v1669 = vmul.f32 %v1653, %v1381
    %v1670 = vmul.f32 %v1654, %v1382
    %v1671 = vmul.f32 %v1655, %v1383
    %v1672 = vmul.f32 %v1656, %v1384
    %v1673 = vmul.f32 %v1657, %v1385
    %v1674 = vmul.f32 %v1658, %v1386
    %v1675 = vmul.f32 %v1659, %v1387
    %v1676 = vmul.f32 %v1660, %v1388
    %v1677 = vadd.f32 %v1661, -0.0073733293
    %v1678 = vadd.f32 %v1662, -0.0073733293
    %v1679 = vadd.f32 %v1663, -0.0073733293
    %v1680 = vadd.f32 %v1664, -0.0073733293
    %v1681 = vadd.f32 %v1665, -0.0073733293
    %v1682 = vadd.f32 %v1666, -0.0073733293
    %v1683 = vadd.f32 %v1667, -0.0073733293
    %v1684 = vadd.f32 %v1668, -0.0073733293
    %v1685 = vadd.f32 %v1669, -0.0073733293
    %v1686 = vadd.f32 %v1670, -0.0073733293
    %v1687 = vadd.f32 %v1671, -0.0073733293
    %v1688 = vadd.f32 %v1672, -0.0073733293
    %v1689 = vadd.f32 %v1673, -0.0073733293
    %v1690 = vadd.f32 %v1674, -0.0073733293
    %v1691 = vadd.f32 %v1675, -0.0073733293
    %v1692 = vadd.f32 %v1676, -0.0073733293
    %v1693 = vmul.f32 %v1677, %v1373
    %v1694 = vmul.f32 %v1678, %v1374
    %v1695 = vmul.f32 %v1679, %v1375
    %v1696 = vmul.f32 %v1680, %v1376
    %v1697 = vmul.f32 %v1681, %v1377
    %v1698 = vmul.f32 %v1682, %v1378
    %v1699 = vmul.f32 %v1683, %v1379
    %v1700 = vmul.f32 %v1684, %v1380
    %v1701 = vmul.f32 %v1685, %v1381
    %v1702 = vmul.f32 %v1686, %v1382
    %v1703 = vmul.f32 %v1687, %v1383
    %v1704 = vmul.f32 %v1688, %v1384
    %v1705 = vmul.f32 %v1689, %v1385
    %v1706 = vmul.f32 %v1690, %v1386
    %v1707 = vmul.f32 %v1691, %v1387
    %v1708 = vmul.f32 %v1692, %v1388
    %v1709 = vadd.f32 %v1693, -0.014264739
    %v1710 = vadd.f32 %v1694, -0.014264739
    %v1711 = vadd.f32 %v1695, -0.014264739
    %v1712 = vadd.f32 %v1696, -0.014264739
    %v1713 = vadd.f32 %v1697, -0.014264739
    %v1714 = vadd.f32 %v1698, -0.014264739
    %v1715 = vadd.f32 %v1699, -0.014264739
    %v1716 = vadd.f32 %v1700, -0.014264739
    %v1717 = vadd.f32 %v1701, -0.014264739
    %v1718 = vadd.f32 %v1702, -0.014264739
    %v1719 = vadd.f32 %v1703, -0.014264739
    %v1720 = vadd.f32 %v1704, -0.014264739
    %v1721 = vadd.f32 %v1705, -0.014264739
    %v1722 = vadd.f32 %v1706, -0.014264739
    %v1723 = vadd.f32 %v1707, -0.014264739
    %v1724 = vadd.f32 %v1708, -0.014264739
    %v1725 = vrcp.pop %v1709
    %v1726 = vrcp.pop %v1710
    %v1727 = vrcp.pop %v1711
    %v1728 = vrcp.pop %v1712
    %v1729 = vrcp.pop %v1713
    %v1730 = vrcp.pop %v1714
    %v1731 = vrcp.pop %v1715
    %v1732 = vrcp.pop %v1716
    %v1733 = vrcp.pop %v1717
    %v1734 = vrcp.pop %v1718
    %v1735 = vrcp.pop %v1719
    %v1736 = vrcp.pop %v1720
    %v1737 = vrcp.pop %v1721
    %v1738 = vrcp.pop %v1722
    %v1739 = vrcp.pop %v1723
    %v1740 = vrcp.pop %v1724
    %v1741 = vmul.f32 %v1709, %v1725
    %v1742 = vmul.f32 %v1710, %v1726
    %v1743 = vmul.f32 %v1711, %v1727
    %v1744 = vmul.f32 %v1712, %v1728
    %v1745 = vmul.f32 %v1713, %v1729
    %v1746 = vmul.f32 %v1714, %v1730
    %v1747 = vmul.f32 %v1715, %v1731
    %v1748 = vmul.f32 %v1716, %v1732
    %v1749 = vmul.f32 %v1717, %v1733
    %v1750 = vmul.f32 %v1718, %v1734
    %v1751 = vmul.f32 %v1719, %v1735
    %v1752 = vmul.f32 %v1720, %v1736
    %v1753 = vmul.f32 %v1721, %v1737
    %v1754 = vmul.f32 %v1722, %v1738
    %v1755 = vmul.f32 %v1723, %v1739
    %v1756 = vmul.f32 %v1724, %v1740
    %v1757 = vsub.f32 2.0, %v1741
    %v1758 = vsub.f32 2.0, %v1742
    %v1759 = vsub.f32 2.0, %v1743
    %v1760 = vsub.f32 2.0, %v1744
    %v1761 = vsub.f32 2.0, %v1745
    %v1762 = vsub.f32 2.0, %v1746
    %v1763 = vsub.f32 2.0, %v1747
    %v1764 = vsub.f32 2.0, %v1748
    %v1765 = vsub.f32 2.0, %v1749
    %v1766 = vsub.f32 2.0, %v1750
    %v1767 = vsub.f32 2.0, %v1751
    %v1768 = vsub.f32 2.0, %v1752
    %v1769 = vsub.f32 2.0, %v1753
    %v1770 = vsub.f32 2.0, %v1754
    %v1771 = vsub.f32 2.0, %v1755
    %v1772 = vsub.f32 2.0, %v1756
    %v1773 = vmul.f32 %v1725, %v1757
    %v1774 = vmul.f32 %v1726, %v1758
    %v1775 = vmul.f32 %v1727, %v1759
    %v1776 = vmul.f32 %v1728, %v1760
    %v1777 = vmul.f32 %v1729, %v1761
    %v1778 = vmul.f32 %v1730, %v1762
    %v1779 = vmul.f32 %v1731, %v1763
    %v1780 = vmul.f32 %v1732, %v1764
    %v1781 = vmul.f32 %v1733, %v1765
    %v1782 = vmul.f32 %v1734, %v1766
    %v1783 = vmul.f32 %v1735, %v1767
    %v1784 = vmul.f32 %v1736, %v1768
    %v1785 = vmul.f32 %v1737, %v1769
    %v1786 = vmul.f32 %v1738, %v1770
    %v1787 = vmul.f32 %v1739, %v1771
    %v1788 = vmul.f32 %v1740, %v1772
    %v1789 = vmul.f32 %v1581, %v1773
    %v1790 = vmul.f32 %v1582, %v1774
    %v1791 = vmul.f32 %v1583, %v1775
    %v1792 = vmul.f32 %v1584, %v1776
    %v1793 = vmul.f32 %v1585, %v1777
    %v1794 = vmul.f32 %v1586, %v1778
    %v1795 = vmul.f32 %v1587, %v1779
    %v1796 = vmul.f32 %v1588, %v1780
    %v1797 = vmul.f32 %v1589, %v1781
    %v1798 = vmul.f32 %v1590, %v1782
    %v1799 = vmul.f32 %v1591, %v1783
    %v1800 = vmul.f32 %v1592, %v1784
    %v1801 = vmul.f32 %v1593, %v1785
    %v1802 = vmul.f32 %v1594, %v1786
    %v1803 = vmul.f32 %v1595, %v1787
    %v1804 = vmul.f32 %v1596, %v1788
    %v1805 = vadd.f32 %v1789, 1.0
    %v1806 = vadd.f32 %v1790, 1.0
    %v1807 = vadd.f32 %v1791, 1.0
    %v1808 = vadd.f32 %v1792, 1.0
    %v1809 = vadd.f32 %v1793, 1.0
    %v1810 = vadd.f32 %v1794, 1.0
    %v1811 = vadd.f32 %v1795, 1.0
    %v1812 = vadd.f32 %v1796, 1.0
    %v1813 = vadd.f32 %v1797, 1.0
    %v1814 = vadd.f32 %v1798, 1.0
    %v1815 = vadd.f32 %v1799, 1.0
    %v1816 = vadd.f32 %v1800, 1.0
    %v1817 = vadd.f32 %v1801, 1.0
    %v1818 = vadd.f32 %v1802, 1.0
    %v1819 = vadd.f32 %v1803, 1.0
    %v1820 = vadd.f32 %v1804, 1.0
    %v1821 = vmul.f32 %v1309, %v1805
    %v1822 = vmul.f32 %v1310, %v1806
    %v1823 = vmul.f32 %v1311, %v1807
    %v1824 = vmul.f32 %v1312, %v1808
    %v1825 = vmul.f32 %v1313, %v1809
    %v1826 = vmul.f32 %v1314, %v1810
    %v1827 = vmul.f32 %v1315, %v1811
    %v1828 = vmul.f32 %v1316, %v1812
    %v1829 = vmul.f32 %v1317, %v1813
    %v1830 = vmul.f32 %v1318, %v1814
    %v1831 = vmul.f32 %v1319, %v1815
    %v1832 = vmul.f32 %v1320, %v1816
    %v1833 = vmul.f32 %v1321, %v1817
    %v1834 = vmul.f32 %v1322, %v1818
    %v1835 = vmul.f32 %v1323, %v1819
    %v1836 = vmul.f32 %v1324, %v1820
    %v1837 = vld [vmem:[%s5] sm:$0xff]
    %v1838 = vld [vmem:[%s5 + $0x8] sm:$0xff]
    %v1839 = vld [vmem:[%s5 + $0x10] sm:$0xff]
    %v1840 = vld [vmem:[%s5 + $0x18] sm:$0xff]
    %vm1841 = vcmask 261120
    %v1843 = vsel %vm1841, %v1821, 0
    %v1846 = vsel %vm1841, %v1822, 0
    %v1849 = vsel %vm1841, %v1823, 0
    %v1852 = vsel %vm1841, %v1824, 0
    %v1855 = vsel %vm1841, %v1825, 0
    %v1858 = vsel %vm1841, %v1826, 0
    %v1861 = vsel %vm1841, %v1827, 0
    %v1864 = vsel %vm1841, %v1828, 0
    %v1867 = vsel %vm1841, %v1829, 0
    %v1870 = vsel %vm1841, %v1830, 0
    %v1873 = vsel %vm1841, %v1831, 0
    %v1876 = vsel %vm1841, %v1832, 0
    %v1879 = vsel %vm1841, %v1833, 0
    %v1882 = vsel %vm1841, %v1834, 0
    %v1885 = vsel %vm1841, %v1835, 0
    %v1888 = vsel %vm1841, %v1836, 0
    %1890 = vmatprep.subr.mxu0 0.0
    %1891 = vmatpush1.msra.mxu0 0.0
    %1892 = vmatprep.subr.mxu0 0.0
    %1893 = vmatpush1.msra.mxu0 0.0
    %1894 = vmatprep.subr.mxu0 0.0
    %1895 = vmatpush1.msra.mxu0 0.0
    %1896 = vmatprep.subr.mxu0 0.0
    %1897 = vmatpush1.msra.mxu0 0.0
    %1898 = vmatprep.subr.mxu0 0.0
    %1899 = vmatpush1.msra.mxu0 0.0
    %1900 = vmatprep.subr.mxu0 0.0
    %1901 = vmatpush1.msra.mxu0 0.0
    %1902 = vmatprep.subr.mxu0 0.0
    %1903 = vmatpush1.msra.mxu0 0.0
    %1904 = vmatprep.subr.mxu0 0.0
    %1905 = vmatpush1.msra.mxu0 0.0
    %1906 = vmatprep.subr.mxu0 0.0
    %1907 = vmatpush1.msra.mxu0 0.0
    %1908 = vmatprep.subr.mxu0 0.0
    %1909 = vmatpush1.msra.mxu0 0.0
    %1910 = vmatprep.subr.mxu0 0.0
    %1911 = vmatpush1.msra.mxu0 0.0
    %1912 = vmatprep.subr.mxu0 0.0
    %1913 = vmatpush1.msra.mxu0 0.0
    %1914 = vmatprep.subr.mxu0 0.0
    %1915 = vmatpush1.msra.mxu0 %v1840
    %1916 = vmatprep.subr.mxu0 0.0
    %1917 = vmatpush1.msra.mxu0 %v1839
    %1918 = vmatprep.subr.mxu0 0.0
    %1919 = vmatpush1.msra.mxu0 %v1838
    %1920 = vmatprep.subr.mxu0 0.0
    %1921 = vmatpush1.msra.mxu0 %v1837
    %1922 = vmatprep.subr.mxu0 0.0
    %1923 = vmatpush2.msra.mxu0 0.0
    %1924 = vmatprep.subr.mxu0 0.0
    %1925 = vmatpush2.msra.mxu0 0.0
    %1926 = vmatprep.subr.mxu0 0.0
    %1927 = vmatpush2.msra.mxu0 0.0
    %1928 = vmatprep.subr.mxu0 0.0
    %1929 = vmatpush2.msra.mxu0 0.0
    %1930 = vmatprep.subr.mxu0 0.0
    %1931 = vmatpush2.msra.mxu0 0.0
    %1932 = vmatprep.subr.mxu0 0.0
    %1933 = vmatpush2.msra.mxu0 0.0
    %1934 = vmatprep.subr.mxu0 0.0
    %1935 = vmatpush2.msra.mxu0 0.0
    %1936 = vmatprep.subr.mxu0 0.0
    %1937 = vmatpush2.msra.mxu0 0.0
    %1938 = vmatprep.subr.mxu0 0.0
    %1939 = vmatpush2.msra.mxu0 0.0
    %1940 = vmatprep.subr.mxu0 0.0
    %1941 = vmatpush2.msra.mxu0 0.0
    %1942 = vmatprep.subr.mxu0 0.0
    %1943 = vmatpush2.msra.mxu0 0.0
    %1944 = vmatprep.subr.mxu0 0.0
    %1945 = vmatpush2.msra.mxu0 0.0
    %1946 = vmatprep.subr.mxu0 0.0
    %1947 = vmatpush2.msra.mxu0 0.0
    %1948 = vmatprep.subr.mxu0 0.0
    %1949 = vmatpush2.msra.mxu0 0.0
    %1950 = vmatprep.subr.mxu0 0.0
    %1951 = vmatpush2.msra.mxu0 0.0
    %1952 = vmatprep.subr.mxu0 0.0
    %1953 = vmatpush2.msra.mxu0 0.0
    %1954 = vmatprep.mubr.f32.mxu0 0.0
    %1955 = vmatmul.mubr.f32.gmra.mxu0 %v1843
    %v1956 = vpop.f32.mrf.mxu0
    %v1957 = vadd.f32 0.0, %v1956
    %v1958 = vpop.f32.mrf.mxu0
    %1959 = vmatprep.mubr.f32.mxu0 0.0
    %1960 = vmatmul.mubr.f32.gmra.mxu0 %v1846
    %v1961 = vpop.f32.mrf.mxu0
    %v1962 = vadd.f32 0.0, %v1961
    %v1963 = vpop.f32.mrf.mxu0
    %1964 = vmatprep.mubr.f32.mxu0 0.0
    %1965 = vmatmul.mubr.f32.gmra.mxu0 %v1849
    %v1966 = vpop.f32.mrf.mxu0
    %v1967 = vadd.f32 0.0, %v1966
    %v1968 = vpop.f32.mrf.mxu0
    %1969 = vmatprep.mubr.f32.mxu0 0.0
    %1970 = vmatmul.mubr.f32.gmra.mxu0 %v1852
    %v1971 = vpop.f32.mrf.mxu0
    %v1972 = vadd.f32 0.0, %v1971
    %v1973 = vpop.f32.mrf.mxu0
    %1974 = vmatprep.mubr.f32.mxu0 0.0
    %1975 = vmatmul.mubr.f32.gmra.mxu0 %v1855
    %v1976 = vpop.f32.mrf.mxu0
    %v1977 = vadd.f32 0.0, %v1976
    %v1978 = vpop.f32.mrf.mxu0
    %1979 = vmatprep.mubr.f32.mxu0 0.0
    %1980 = vmatmul.mubr.f32.gmra.mxu0 %v1858
    %v1981 = vpop.f32.mrf.mxu0
    %v1982 = vadd.f32 0.0, %v1981
    %v1983 = vpop.f32.mrf.mxu0
    %1984 = vmatprep.mubr.f32.mxu0 0.0
    %1985 = vmatmul.mubr.f32.gmra.mxu0 %v1861
    %v1986 = vpop.f32.mrf.mxu0
    %v1987 = vadd.f32 0.0, %v1986
    %v1988 = vpop.f32.mrf.mxu0
    %1989 = vmatprep.mubr.f32.mxu0 0.0
    %1990 = vmatmul.mubr.f32.gmra.mxu0 %v1864
    %v1991 = vpop.f32.mrf.mxu0
    %v1992 = vadd.f32 0.0, %v1991
    %v1993 = vpop.f32.mrf.mxu0
    %1994 = vmatprep.mubr.f32.mxu0 0.0
    %1995 = vmatmul.mubr.f32.gmra.mxu0 %v1867
    %v1996 = vpop.f32.mrf.mxu0
    %v1997 = vadd.f32 0.0, %v1996
    %v1998 = vpop.f32.mrf.mxu0
    %1999 = vmatprep.mubr.f32.mxu0 0.0
    %2000 = vmatmul.mubr.f32.gmra.mxu0 %v1870
    %v2001 = vpop.f32.mrf.mxu0
    %v2002 = vadd.f32 0.0, %v2001
    %v2003 = vpop.f32.mrf.mxu0
    %2004 = vmatprep.mubr.f32.mxu0 0.0
    %2005 = vmatmul.mubr.f32.gmra.mxu0 %v1873
    %v2006 = vpop.f32.mrf.mxu0
    %v2007 = vadd.f32 0.0, %v2006
    %v2008 = vpop.f32.mrf.mxu0
    %2009 = vmatprep.mubr.f32.mxu0 0.0
    %2010 = vmatmul.mubr.f32.gmra.mxu0 %v1876
    %v2011 = vpop.f32.mrf.mxu0
    %v2012 = vadd.f32 0.0, %v2011
    %v2013 = vpop.f32.mrf.mxu0
    %2014 = vmatprep.mubr.f32.mxu0 0.0
    %2015 = vmatmul.mubr.f32.gmra.mxu0 %v1879
    %v2016 = vpop.f32.mrf.mxu0
    %v2017 = vadd.f32 0.0, %v2016
    %v2018 = vpop.f32.mrf.mxu0
    %2019 = vmatprep.mubr.f32.mxu0 0.0
    %2020 = vmatmul.mubr.f32.gmra.mxu0 %v1882
    %v2021 = vpop.f32.mrf.mxu0
    %v2022 = vadd.f32 0.0, %v2021
    %v2023 = vpop.f32.mrf.mxu0
    %2024 = vmatprep.mubr.f32.mxu0 0.0
    %2025 = vmatmul.mubr.f32.gmra.mxu0 %v1885
    %v2026 = vpop.f32.mrf.mxu0
    %v2027 = vadd.f32 0.0, %v2026
    %v2028 = vpop.f32.mrf.mxu0
    %2029 = vmatprep.mubr.f32.mxu0 0.0
    %2030 = vmatmul.mubr.f32.gmra.mxu0 %v1888
    %v2031 = vpop.f32.mrf.mxu0
    %v2032 = vadd.f32 0.0, %v2031
    %v2033 = vpop.f32.mrf.mxu0
    %2034 = vdwg.mxu0
    %p2035 = scmp.eq.s32.totalorder 0, 0
    // Predicated region
    $region30: #{tpu_custom_call.1} parent=1 // pred_check
      %p2036 = pneg %p2035
    $region31: #{tpu_custom_call.1} parent=1 // pred_check_branch
      %2038 = sbr.rel (%p2036) target = $region33
    $region32: #{tpu_custom_call.1} parent=1 // pred_region
      %v2039 = vld [vmem:[%s6] sm:$0x1]
      %v2041 = vlaneseq
      %v2042 = vshrl.u32 %v2041, 7
      %v2043 = vsub.s32 0, %v2042
      %v2044 = vrot.slane %v2039, %v2043
      %v2046 = vadd.f32 %v1957, %v2044
      %v2047 = vadd.f32 %v1962, %v2044
      %v2048 = vadd.f32 %v1967, %v2044
      %v2049 = vadd.f32 %v1972, %v2044
      %v2050 = vadd.f32 %v1977, %v2044
      %v2051 = vadd.f32 %v1982, %v2044
      %v2052 = vadd.f32 %v1987, %v2044
      %v2053 = vadd.f32 %v1992, %v2044
      %v2054 = vadd.f32 %v1997, %v2044
      %v2055 = vadd.f32 %v2002, %v2044
      %v2056 = vadd.f32 %v2007, %v2044
      %v2057 = vadd.f32 %v2012, %v2044
      %v2058 = vadd.f32 %v2017, %v2044
      %v2059 = vadd.f32 %v2022, %v2044
      %v2060 = vadd.f32 %v2027, %v2044
      %v2061 = vadd.f32 %v2032, %v2044
      %2062 = vst [vmem:[#allocation2] sm:$0xff] %v2046
      %2063 = vst [vmem:[#allocation2 + $0x8] sm:$0xff] %v2047
      %2064 = vst [vmem:[#allocation2 + $0x10] sm:$0xff] %v2048
      %2065 = vst [vmem:[#allocation2 + $0x18] sm:$0xff] %v2049
      %2066 = vst [vmem:[#allocation2 + $0x20] sm:$0xff] %v2050
      %2067 = vst [vmem:[#allocation2 + $0x28] sm:$0xff] %v2051
      %2068 = vst [vmem:[#allocation2 + $0x30] sm:$0xff] %v2052
      %2069 = vst [vmem:[#allocation2 + $0x38] sm:$0xff] %v2053
      %2070 = vst [vmem:[#allocation2 + $0x40] sm:$0xff] %v2054
      %2071 = vst [vmem:[#allocation2 + $0x48] sm:$0xff] %v2055
      %2072 = vst [vmem:[#allocation2 + $0x50] sm:$0xff] %v2056
      %2073 = vst [vmem:[#allocation2 + $0x58] sm:$0xff] %v2057
      %2074 = vst [vmem:[#allocation2 + $0x60] sm:$0xff] %v2058
      %2075 = vst [vmem:[#allocation2 + $0x68] sm:$0xff] %v2059
      %2076 = vst [vmem:[#allocation2 + $0x70] sm:$0xff] %v2060
      %2077 = vst [vmem:[#allocation2 + $0x78] sm:$0xff] %v2061
    $region33: #{tpu_custom_call.1} parent=1 // pred_fallthru
      _
    %p2078 = scmp.gt.s32.totalorder 0, 0
    // Predicated region
    $region34: #{tpu_custom_call.1} parent=1 // pred_check
      %p2079 = pneg %p2078
    $region35: #{tpu_custom_call.1} parent=1 // pred_check_branch
      %2081 = sbr.rel (%p2079) target = $region37
    $region36: #{tpu_custom_call.1} parent=1 // pred_region
      %v2082 = vld [vmem:[#allocation2] sm:$0xff]
      %v2083 = vld [vmem:[#allocation2 + $0x8] sm:$0xff]
      %v2084 = vld [vmem:[#allocation2 + $0x10] sm:$0xff]
      %v2085 = vld [vmem:[#allocation2 + $0x18] sm:$0xff]
      %v2086 = vld [vmem:[#allocation2 + $0x20] sm:$0xff]
      %v2087 = vld [vmem:[#allocation2 + $0x28] sm:$0xff]
      %v2088 = vld [vmem:[#allocation2 + $0x30] sm:$0xff]
      %v2089 = vld [vmem:[#allocation2 + $0x38] sm:$0xff]
      %v2090 = vld [vmem:[#allocation2 + $0x40] sm:$0xff]
      %v2091 = vld [vmem:[#allocation2 + $0x48] sm:$0xff]
      %v2092 = vld [vmem:[#allocation2 + $0x50] sm:$0xff]
      %v2093 = vld [vmem:[#allocation2 + $0x58] sm:$0xff]
      %v2094 = vld [vmem:[#allocation2 + $0x60] sm:$0xff]
      %v2095 = vld [vmem:[#allocation2 + $0x68] sm:$0xff]
      %v2096 = vld [vmem:[#allocation2 + $0x70] sm:$0xff]
      %v2097 = vld [vmem:[#allocation2 + $0x78] sm:$0xff]
      %v2098 = vadd.f32 %v2082, %v1957
      %v2099 = vadd.f32 %v2083, %v1962
      %v2100 = vadd.f32 %v2084, %v1967
      %v2101 = vadd.f32 %v2085, %v1972
      %v2102 = vadd.f32 %v2086, %v1977
      %v2103 = vadd.f32 %v2087, %v1982
      %v2104 = vadd.f32 %v2088, %v1987
      %v2105 = vadd.f32 %v2089, %v1992
      %v2106 = vadd.f32 %v2090, %v1997
      %v2107 = vadd.f32 %v2091, %v2002
      %v2108 = vadd.f32 %v2092, %v2007
      %v2109 = vadd.f32 %v2093, %v2012
      %v2110 = vadd.f32 %v2094, %v2017
      %v2111 = vadd.f32 %v2095, %v2022
      %v2112 = vadd.f32 %v2096, %v2027
      %v2113 = vadd.f32 %v2097, %v2032
      %2114 = vst [vmem:[#allocation2] sm:$0xff] %v2098
      %2115 = vst [vmem:[#allocation2 + $0x8] sm:$0xff] %v2099
      %2116 = vst [vmem:[#allocation2 + $0x10] sm:$0xff] %v2100
      %2117 = vst [vmem:[#allocation2 + $0x18] sm:$0xff] %v2101
      %2118 = vst [vmem:[#allocation2 + $0x20] sm:$0xff] %v2102
      %2119 = vst [vmem:[#allocation2 + $0x28] sm:$0xff] %v2103
      %2120 = vst [vmem:[#allocation2 + $0x30] sm:$0xff] %v2104
      %2121 = vst [vmem:[#allocation2 + $0x38] sm:$0xff] %v2105
      %2122 = vst [vmem:[#allocation2 + $0x40] sm:$0xff] %v2106
      %2123 = vst [vmem:[#allocation2 + $0x48] sm:$0xff] %v2107
      %2124 = vst [vmem:[#allocation2 + $0x50] sm:$0xff] %v2108
      %2125 = vst [vmem:[#allocation2 + $0x58] sm:$0xff] %v2109
      %2126 = vst [vmem:[#allocation2 + $0x60] sm:$0xff] %v2110
      %2127 = vst [vmem:[#allocation2 + $0x68] sm:$0xff] %v2111
      %2128 = vst [vmem:[#allocation2 + $0x70] sm:$0xff] %v2112
      %2129 = vst [vmem:[#allocation2 + $0x78] sm:$0xff] %v2113
    $region37: #{tpu_custom_call.1} parent=1 // pred_fallthru
      _
    // Predicated region
    $region38: #{tpu_custom_call.1} parent=1 // pred_check
      _
    $region39: #{tpu_custom_call.1} parent=1 // pred_check_branch
      %2131 = sbr.rel (0) target = $region41
    $region40: #{tpu_custom_call.1} parent=1 // pred_region
      %s2133 = ssub.s32 2048, 2048
      %2134 = vsyncadd [#allocation3], %s2133
      %s2135 = sshll.u32 [#allocation2], 4
      %s2136 = int_to_ptr.vmem [resolvable:$true] %s2135
      %2141 = dma.vmem_to_hbm [thread:$0]  %s2136, 2048, %s7, [#allocation3], 128, 128, 8
    $region41: #{tpu_custom_call.1} parent=1 // pred_fallthru
      _
    // Predicated region
    $region42: #{tpu_custom_call.1} parent=1 // pred_check
      _
    $region43: #{tpu_custom_call.1} parent=1 // pred_check_branch
      %2143 = sbr.rel (0) target = $region45
    $region44: #{tpu_custom_call.1} parent=1 // pred_region
      %2144 = dma.done [#allocation3], 2048
    $region45: #{tpu_custom_call.1} parent=1 // pred_fallthru
      _
    %2145 = vsyncpa [#allocation3], 1

</llo_original>
